<compile_context>
chip_gen: v5e
topology: v5e:2x2
jax: 0.10.0
libtpu: 0.0.40
codegen_flags: <defaults>
</compile_context>

<pallas_src>
import math

import jax
import jax.numpy as jnp
from jax.experimental import pallas as pl
from jax.experimental.pallas import tpu as pltpu


def _attn_lstm_kernel(x_ref, At_ref, Wx_ref, Wh_ref, Wattn_ref, b_ref, hn_ref):
    # Everything is VMEM-resident; loads hoisted out of the time loop.
    x2 = x_ref[...]          # (T*N, D)   time-major rows: row t*N + n
    At = At_ref[...]         # (N, P, H)  H on lanes, P on sublanes
    Wx = Wx_ref[...]         # (D, 4H)
    Wh = Wh_ref[...]         # (H, 4H)
    Wattn = Wattn_ref[...]   # (H, 4H)
    b = b_ref[...]           # (1, 4H)

    TN, D = x2.shape
    N, P, H = At.shape
    T = TN // N
    inv_sqrt_H = 1.0 / math.sqrt(H)

    # ---- hoisted input projection: one MXU matmul covers all T steps ----
    # xproj[t*N + n, :] = x[n, t, :] @ Wx + b
    xproj = jnp.dot(x2, Wx, preferred_element_type=jnp.float32) + b   # (T*N, 4H)

    # h0 = c0 = mean-pooled A   (PyTorch: A.mean(dim=(2, 3)))
    h = jnp.mean(At, axis=1)   # (N, H)
    c = h

    # Statically unrolled recurrence over time (T small and static).
    for t in range(T):
        # Recurrent gate part depends only on h(t-1): issue it first so the
        # MXU work overlaps the attention VPU/XLU/EUP chain below.
        a_h = (jnp.dot(h, Wh, preferred_element_type=jnp.float32)
               + xproj[t * N:(t + 1) * N, :])                          # (N, 4H)

        # ---- scaled dot-product attention ----
        # scores[n, p] = sum_h h[n, h] * A[n, p, h]      (lane reduction)
        scores = jnp.sum(h[:, None, :] * At, axis=2) * inv_sqrt_H      # (N, P)
        scores = scores - jnp.max(scores, axis=1, keepdims=True)
        e = jnp.exp(scores)
        denom = jnp.sum(e, axis=1, keepdims=True)
        attn_w = e * pl.reciprocal(denom, approx=True)                 # (N, P)
        # attn[n, h] = sum_p attn_w[n, p] * A[n, p, h]   (sublane reduction)
        attn = jnp.sum(attn_w[:, :, None] * At, axis=1)                # (N, H)

        # Remaining K=H matmul on the critical path once attn is ready.
        # TODO(synk): on v7x express this as an MRB-accumulated dot chain.
        a = a_h + jnp.dot(attn, Wattn, preferred_element_type=jnp.float32)

        # Slice BEFORE the transcendentals: sigmoid on 3H lanes, tanh on H.
        sig = jax.nn.sigmoid(a[:, :3 * H])
        g = jnp.tanh(a[:, 3 * H:])
        i = sig[:, 0 * H:1 * H]
        f = sig[:, 1 * H:2 * H]
        o = sig[:, 2 * H:3 * H]

        c = f * c + i * g
        h = o * jnp.tanh(c)

        # Lane-dense (N, T*H) output slab; per-step store is 2x32 and cheap.
        hn_ref[:, t * H:(t + 1) * H] = h.astype(hn_ref.dtype)


def attention_lstm_forward(x, A, Wx, Wh, Wattn, b):
    """x: (N, T, D), A: (N, H, 4, 4)  ->  hn: (N, T, H)"""
    N, T, D = x.shape
    H = A.shape[1]
    P = A.shape[2] * A.shape[3]

    # Time-major (T*N, D): per-step xproj slice becomes a contiguous sublane
    # slice inside the kernel (no per-step gather / lane concat).
    x_tm = jnp.transpose(x, (1, 0, 2)).reshape(T * N, D)
    # (N, P, H): H on the lane axis, P on sublanes -> denser attention vregs.
    A_t = jnp.transpose(A.reshape(N, H, P), (0, 2, 1))
    b2 = b.reshape(1, 4 * H)

    grid_spec = pltpu.PrefetchScalarGridSpec(
        num_scalar_prefetch=0,
        grid=(1,),                                            # single program
        in_specs=[
            pl.BlockSpec((T * N, D), lambda i: (0, 0)),       # x (time-major)
            pl.BlockSpec((N, P, H), lambda i: (0, 0, 0)),     # A (N, P, H)
            pl.BlockSpec((D, 4 * H), lambda i: (0, 0)),       # Wx
            pl.BlockSpec((H, 4 * H), lambda i: (0, 0)),       # Wh
            pl.BlockSpec((H, 4 * H), lambda i: (0, 0)),       # Wattn
            pl.BlockSpec((1, 4 * H), lambda i: (0, 0)),       # bias
        ],
        out_specs=pl.BlockSpec((N, T * H), lambda i: (0, 0)), # lane-dense slab
    )

    hn_flat = pl.pallas_call(
        _attn_lstm_kernel,
        out_shape=jax.ShapeDtypeStruct((N, T * H), jnp.float32),
        grid_spec=grid_spec,
        compiler_params=pltpu.CompilerParams(
            dimension_semantics=("arbitrary",)),
    )(x_tm, A_t, Wx, Wh, Wattn, b2)

    return hn_flat.reshape(N, T, H)


# ---- pure-JAX reference (mirrors the PyTorch module exactly) ----
def _reference_forward(x, A, Wx, Wh, Wattn, b):
    N, T, D = x.shape
    H = A.shape[1]
    A_flat = A.reshape(N, H, -1)
    h = jnp.mean(A, axis=(2, 3))
    c = h
    hs = []
    for t in range(T):
        scores = jnp.einsum('nh,nhp->np', h, A_flat) / math.sqrt(H)
        w = jax.nn.softmax(scores, axis=1)
        attn = jnp.einsum('nhp,np->nh', A_flat, w)
        a = x[:, t] @ Wx + h @ Wh + b + attn @ Wattn
        ai, af, ao, ag = jnp.split(a, 4, axis=1)
        i, f, o, g = (jax.nn.sigmoid(ai), jax.nn.sigmoid(af),
                      jax.nn.sigmoid(ao), jnp.tanh(ag))
        c = f * c + i * g
        h = o * jnp.tanh(c)
        hs.append(h)
    return jnp.stack(hs, axis=1)


if __name__ == "__main__":
    N, T, D, H = 2, 8, 32, 32

    key = jax.random.PRNGKey(0)
    kx, kA, kWx, kWh, kWa = jax.random.split(key, 5)

    x = jax.random.normal(kx, (N, T, D), dtype=jnp.float32)
    A = jax.random.normal(kA, (N, H, 4, 4), dtype=jnp.float32)

    # deterministic parameter init matching the module's __init__ shapes/scales
    Wx = jax.random.normal(kWx, (D, 4 * H), dtype=jnp.float32) / math.sqrt(D)
    Wh = jax.random.normal(kWh, (H, 4 * H), dtype=jnp.float32) / math.sqrt(H)
    Wattn = jax.random.normal(kWa, (H, 4 * H), dtype=jnp.float32) / math.sqrt(H)
    b = jnp.zeros((4 * H,), dtype=jnp.float32)

    hn = attention_lstm_forward(x, A, Wx, Wh, Wattn, b)
    hn = jax.block_until_ready(hn)

    ref = _reference_forward(x, A, Wx, Wh, Wattn, b)
    assert hn.shape == (N, T, H)
    # Tolerance relaxed slightly (2e-3) for the approx EUP reciprocal in the
    # softmax denominator; everything else is exact f32 math.
    assert jnp.allclose(hn, ref, atol=2e-3, rtol=2e-3), "mismatch vs reference"

    print("KERNEL_OK")
</pallas_src>

<mosaic_0001>
module attributes {stable_mosaic.version = 11 : i64} {
  func.func @_attn_lstm_kernel(%arg0: i32, %arg1: memref<16x32xf32, #tpu.memory_space<vmem>>, %arg2: memref<2x16x32xf32, #tpu.memory_space<vmem>>, %arg3: memref<32x128xf32, #tpu.memory_space<vmem>>, %arg4: memref<32x128xf32, #tpu.memory_space<vmem>>, %arg5: memref<32x128xf32, #tpu.memory_space<vmem>>, %arg6: memref<1x128xf32, #tpu.memory_space<vmem>>, %arg7: memref<2x256xf32, #tpu.memory_space<vmem>>) attributes {dimension_semantics = [#tpu.dimension_semantics<arbitrary>], iteration_bounds = array<i64: 1>, scalar_prefetch = 0 : i64, scratch_operands = 0 : i64, tpu.core_type = #tpu.core_type<tc>, window_params = [{pipeline_mode = #tpu.pipeline_mode<synchronous>, transform_indices = @transform_0, window_bounds = array<i64: 16, 32>}, {pipeline_mode = #tpu.pipeline_mode<synchronous>, transform_indices = @transform_1, window_bounds = array<i64: 2, 16, 32>}, {pipeline_mode = #tpu.pipeline_mode<synchronous>, transform_indices = @transform_2, window_bounds = array<i64: 32, 128>}, {pipeline_mode = #tpu.pipeline_mode<synchronous>, transform_indices = @transform_3, window_bounds = array<i64: 32, 128>}, {pipeline_mode = #tpu.pipeline_mode<synchronous>, transform_indices = @transform_4, window_bounds = array<i64: 32, 128>}, {pipeline_mode = #tpu.pipeline_mode<synchronous>, transform_indices = @transform_5, window_bounds = array<i64: 1, 128>}, {pipeline_mode = #tpu.pipeline_mode<synchronous>, transform_indices = @transform_6, window_bounds = array<i64: 2, 256>}]} {
    %c0 = arith.constant 0 : index
    %c0_0 = arith.constant 0 : index
    %0 = vector.load %arg1[%c0, %c0_0] : memref<16x32xf32, #tpu.memory_space<vmem>>, vector<16x32xf32>
    %c0_1 = arith.constant 0 : index
    %c0_2 = arith.constant 0 : index
    %c0_3 = arith.constant 0 : index
    %1 = vector.load %arg2[%c0_1, %c0_2, %c0_3] : memref<2x16x32xf32, #tpu.memory_space<vmem>>, vector<2x16x32xf32>
    %c0_4 = arith.constant 0 : index
    %c0_5 = arith.constant 0 : index
    %2 = vector.load %arg3[%c0_4, %c0_5] : memref<32x128xf32, #tpu.memory_space<vmem>>, vector<32x128xf32>
    %c0_6 = arith.constant 0 : index
    %c0_7 = arith.constant 0 : index
    %3 = vector.load %arg4[%c0_6, %c0_7] : memref<32x128xf32, #tpu.memory_space<vmem>>, vector<32x128xf32>
    %c0_8 = arith.constant 0 : index
    %c0_9 = arith.constant 0 : index
    %4 = vector.load %arg5[%c0_8, %c0_9] : memref<32x128xf32, #tpu.memory_space<vmem>>, vector<32x128xf32>
    %c0_10 = arith.constant 0 : index
    %c0_11 = arith.constant 0 : index
    %5 = vector.load %arg6[%c0_10, %c0_11] : memref<1x128xf32, #tpu.memory_space<vmem>>, vector<1x128xf32>
    %cst = arith.constant dense<0.000000e+00> : vector<16x128xf32>
    %6 = tpu.matmul %0, %2, %cst {dimension_numbers = #tpu.dot_dimension_numbers<[1], [0], [0], [1], [0, 0, 1, 1], [], []>} : vector<16x32xf32>, vector<32x128xf32>, vector<16x128xf32> -> vector<16x128xf32>
    %7 = vector.broadcast %5 : vector<1x128xf32> to vector<16x128xf32>
    %8 = arith.addf %6, %7 : vector<16x128xf32>
    %cst_12 = arith.constant dense<0.000000e+00> : vector<2x32xf32>
    %9 = vector.multi_reduction <add>, %1, %cst_12 [1] : vector<2x16x32xf32> to vector<2x32xf32>
    %cst_13 = arith.constant 1.600000e+01 : f32
    %10 = vector.broadcast %cst_13 : f32 to vector<2x32xf32>
    %11 = arith.divf %9, %10 : vector<2x32xf32>
    %cst_14 = arith.constant dense<0.000000e+00> : vector<2x128xf32>
    %12 = tpu.matmul %11, %3, %cst_14 {dimension_numbers = #tpu.dot_dimension_numbers<[1], [0], [0], [1], [0, 0, 1, 1], [], []>} : vector<2x32xf32>, vector<32x128xf32>, vector<2x128xf32> -> vector<2x128xf32>
    %13 = vector.extract_strided_slice %8 {offsets = [0, 0], sizes = [2, 128], strides = [1, 1]} : vector<16x128xf32> to vector<2x128xf32>
    %14 = arith.addf %12, %13 : vector<2x128xf32>
    %15 = vector.shape_cast %11 : vector<2x32xf32> to vector<2x1x32xf32>
    %16 = vector.broadcast %15 : vector<2x1x32xf32> to vector<2x16x32xf32>
    %17 = arith.mulf %16, %1 : vector<2x16x32xf32>
    %cst_15 = arith.constant dense<0.000000e+00> : vector<2x16xf32>
    %18 = vector.multi_reduction <add>, %17, %cst_15 [2] : vector<2x16x32xf32> to vector<2x16xf32>
    %cst_16 = arith.constant 0.176776692 : f32
    %19 = vector.broadcast %cst_16 : f32 to vector<2x16xf32>
    %20 = arith.mulf %18, %19 : vector<2x16xf32>
    %cst_17 = arith.constant dense<0xFF800000> : vector<2xf32>
    %21 = vector.multi_reduction <maximumf>, %20, %cst_17 [1] : vector<2x16xf32> to vector<2xf32>
    %22 = vector.shape_cast %21 : vector<2xf32> to vector<2x1xf32>
    %23 = vector.broadcast %22 : vector<2x1xf32> to vector<2x16xf32>
    %24 = arith.subf %20, %23 : vector<2x16xf32>
    %25 = math.exp %24 : vector<2x16xf32>
    %cst_18 = arith.constant dense<0.000000e+00> : vector<2xf32>
    %26 = vector.multi_reduction <add>, %25, %cst_18 [1] : vector<2x16xf32> to vector<2xf32>
    %27 = vector.shape_cast %26 : vector<2xf32> to vector<2x1xf32>
    %28 = tpu.reciprocal %27 {approx = true} : vector<2x1xf32> -> vector<2x1xf32>
    %29 = vector.broadcast %28 : vector<2x1xf32> to vector<2x16xf32>
    %30 = arith.mulf %25, %29 : vector<2x16xf32>
    %31 = vector.shape_cast %30 : vector<2x16xf32> to vector<2x16x1xf32>
    %32 = vector.broadcast %31 : vector<2x16x1xf32> to vector<2x16x32xf32>
    %33 = arith.mulf %32, %1 : vector<2x16x32xf32>
    %cst_19 = arith.constant dense<0.000000e+00> : vector<2x32xf32>
    %34 = vector.multi_reduction <add>, %33, %cst_19 [1] : vector<2x16x32xf32> to vector<2x32xf32>
    %cst_20 = arith.constant dense<0.000000e+00> : vector<2x128xf32>
    %35 = tpu.matmul %34, %4, %cst_20 {dimension_numbers = #tpu.dot_dimension_numbers<[1], [0], [0], [1], [0, 0, 1, 1], [], []>} : vector<2x32xf32>, vector<32x128xf32>, vector<2x128xf32> -> vector<2x128xf32>
    %36 = arith.addf %14, %35 : vector<2x128xf32>
    %37 = vector.extract_strided_slice %36 {offsets = [0, 0], sizes = [2, 96], strides = [1, 1]} : vector<2x128xf32> to vector<2x96xf32>
    %38 = arith.negf %37 : vector<2x96xf32>
    %39 = math.exp %38 : vector<2x96xf32>
    %cst_21 = arith.constant 1.000000e+00 : f32
    %40 = vector.broadcast %cst_21 : f32 to vector<2x96xf32>
    %41 = arith.addf %40, %39 : vector<2x96xf32>
    %42 = arith.divf %40, %41 : vector<2x96xf32>
    %43 = vector.extract_strided_slice %36 {offsets = [0, 96], sizes = [2, 32], strides = [1, 1]} : vector<2x128xf32> to vector<2x32xf32>
    %44 = math.tanh %43 : vector<2x32xf32>
    %45 = vector.extract_strided_slice %42 {offsets = [0, 0], sizes = [2, 32], strides = [1, 1]} : vector<2x96xf32> to vector<2x32xf32>
    %46 = vector.extract_strided_slice %42 {offsets = [0, 32], sizes = [2, 32], strides = [1, 1]} : vector<2x96xf32> to vector<2x32xf32>
    %47 = vector.extract_strided_slice %42 {offsets = [0, 64], sizes = [2, 32], strides = [1, 1]} : vector<2x96xf32> to vector<2x32xf32>
    %48 = arith.mulf %46, %11 : vector<2x32xf32>
    %49 = arith.mulf %45, %44 : vector<2x32xf32>
    %50 = arith.addf %48, %49 : vector<2x32xf32>
    %51 = math.tanh %50 : vector<2x32xf32>
    %52 = arith.mulf %47, %51 : vector<2x32xf32>
    %c0_22 = arith.constant 0 : index
    %c0_23 = arith.constant 0 : index
    %53 = vector.load %arg7[%c0_22, %c0_23] : memref<2x256xf32, #tpu.memory_space<vmem>>, vector<2x32xf32>
    tpu.vector_store %arg7[%c0_22, %c0_23], %52 {strides = array<i32>} : memref<2x256xf32, #tpu.memory_space<vmem>>, vector<2x32xf32>,
    %cst_24 = arith.constant dense<0.000000e+00> : vector<2x128xf32>
    %54 = tpu.matmul %52, %3, %cst_24 {dimension_numbers = #tpu.dot_dimension_numbers<[1], [0], [0], [1], [0, 0, 1, 1], [], []>} : vector<2x32xf32>, vector<32x128xf32>, vector<2x128xf32> -> vector<2x128xf32>
    %55 = vector.extract_strided_slice %8 {offsets = [2, 0], sizes = [2, 128], strides = [1, 1]} : vector<16x128xf32> to vector<2x128xf32>
    %56 = arith.addf %54, %55 : vector<2x128xf32>
    %57 = vector.shape_cast %52 : vector<2x32xf32> to vector<2x1x32xf32>
    %58 = vector.broadcast %57 : vector<2x1x32xf32> to vector<2x16x32xf32>
    %59 = arith.mulf %58, %1 : vector<2x16x32xf32>
    %cst_25 = arith.constant dense<0.000000e+00> : vector<2x16xf32>
    %60 = vector.multi_reduction <add>, %59, %cst_25 [2] : vector<2x16x32xf32> to vector<2x16xf32>
    %cst_26 = arith.constant 0.176776692 : f32
    %61 = vector.broadcast %cst_26 : f32 to vector<2x16xf32>
    %62 = arith.mulf %60, %61 : vector<2x16xf32>
    %cst_27 = arith.constant dense<0xFF800000> : vector<2xf32>
    %63 = vector.multi_reduction <maximumf>, %62, %cst_27 [1] : vector<2x16xf32> to vector<2xf32>
    %64 = vector.shape_cast %63 : vector<2xf32> to vector<2x1xf32>
    %65 = vector.broadcast %64 : vector<2x1xf32> to vector<2x16xf32>
    %66 = arith.subf %62, %65 : vector<2x16xf32>
    %67 = math.exp %66 : vector<2x16xf32>
    %cst_28 = arith.constant dense<0.000000e+00> : vector<2xf32>
    %68 = vector.multi_reduction <add>, %67, %cst_28 [1] : vector<2x16xf32> to vector<2xf32>
    %69 = vector.shape_cast %68 : vector<2xf32> to vector<2x1xf32>
    %70 = tpu.reciprocal %69 {approx = true} : vector<2x1xf32> -> vector<2x1xf32>
    %71 = vector.broadcast %70 : vector<2x1xf32> to vector<2x16xf32>
    %72 = arith.mulf %67, %71 : vector<2x16xf32>
    %73 = vector.shape_cast %72 : vector<2x16xf32> to vector<2x16x1xf32>
    %74 = vector.broadcast %73 : vector<2x16x1xf32> to vector<2x16x32xf32>
    %75 = arith.mulf %74, %1 : vector<2x16x32xf32>
    %cst_29 = arith.constant dense<0.000000e+00> : vector<2x32xf32>
    %76 = vector.multi_reduction <add>, %75, %cst_29 [1] : vector<2x16x32xf32> to vector<2x32xf32>
    %cst_30 = arith.constant dense<0.000000e+00> : vector<2x128xf32>
    %77 = tpu.matmul %76, %4, %cst_30 {dimension_numbers = #tpu.dot_dimension_numbers<[1], [0], [0], [1], [0, 0, 1, 1], [], []>} : vector<2x32xf32>, vector<32x128xf32>, vector<2x128xf32> -> vector<2x128xf32>
    %78 = arith.addf %56, %77 : vector<2x128xf32>
    %79 = vector.extract_strided_slice %78 {offsets = [0, 0], sizes = [2, 96], strides = [1, 1]} : vector<2x128xf32> to vector<2x96xf32>
    %80 = arith.negf %79 : vector<2x96xf32>
    %81 = math.exp %80 : vector<2x96xf32>
    %cst_31 = arith.constant 1.000000e+00 : f32
    %82 = vector.broadcast %cst_31 : f32 to vector<2x96xf32>
    %83 = arith.addf %82, %81 : vector<2x96xf32>
    %84 = arith.divf %82, %83 : vector<2x96xf32>
    %85 = vector.extract_strided_slice %78 {offsets = [0, 96], sizes = [2, 32], strides = [1, 1]} : vector<2x128xf32> to vector<2x32xf32>
    %86 = math.tanh %85 : vector<2x32xf32>
    %87 = vector.extract_strided_slice %84 {offsets = [0, 0], sizes = [2, 32], strides = [1, 1]} : vector<2x96xf32> to vector<2x32xf32>
    %88 = vector.extract_strided_slice %84 {offsets = [0, 32], sizes = [2, 32], strides = [1, 1]} : vector<2x96xf32> to vector<2x32xf32>
    %89 = vector.extract_strided_slice %84 {offsets = [0, 64], sizes = [2, 32], strides = [1, 1]} : vector<2x96xf32> to vector<2x32xf32>
    %90 = arith.mulf %88, %50 : vector<2x32xf32>
    %91 = arith.mulf %87, %86 : vector<2x32xf32>
    %92 = arith.addf %90, %91 : vector<2x32xf32>
    %93 = math.tanh %92 : vector<2x32xf32>
    %94 = arith.mulf %89, %93 : vector<2x32xf32>
    %c0_32 = arith.constant 0 : index
    %c32 = arith.constant 32 : index
    %95 = vector.load %arg7[%c0_32, %c32] : memref<2x256xf32, #tpu.memory_space<vmem>>, vector<2x32xf32>
    tpu.vector_store %arg7[%c0_32, %c32], %94 {strides = array<i32>} : memref<2x256xf32, #tpu.memory_space<vmem>>, vector<2x32xf32>,
    %cst_33 = arith.constant dense<0.000000e+00> : vector<2x128xf32>
    %96 = tpu.matmul %94, %3, %cst_33 {dimension_numbers = #tpu.dot_dimension_numbers<[1], [0], [0], [1], [0, 0, 1, 1], [], []>} : vector<2x32xf32>, vector<32x128xf32>, vector<2x128xf32> -> vector<2x128xf32>
    %97 = vector.extract_strided_slice %8 {offsets = [4, 0], sizes = [2, 128], strides = [1, 1]} : vector<16x128xf32> to vector<2x128xf32>
    %98 = arith.addf %96, %97 : vector<2x128xf32>
    %99 = vector.shape_cast %94 : vector<2x32xf32> to vector<2x1x32xf32>
    %100 = vector.broadcast %99 : vector<2x1x32xf32> to vector<2x16x32xf32>
    %101 = arith.mulf %100, %1 : vector<2x16x32xf32>
    %cst_34 = arith.constant dense<0.000000e+00> : vector<2x16xf32>
    %102 = vector.multi_reduction <add>, %101, %cst_34 [2] : vector<2x16x32xf32> to vector<2x16xf32>
    %cst_35 = arith.constant 0.176776692 : f32
    %103 = vector.broadcast %cst_35 : f32 to vector<2x16xf32>
    %104 = arith.mulf %102, %103 : vector<2x16xf32>
    %cst_36 = arith.constant dense<0xFF800000> : vector<2xf32>
    %105 = vector.multi_reduction <maximumf>, %104, %cst_36 [1] : vector<2x16xf32> to vector<2xf32>
    %106 = vector.shape_cast %105 : vector<2xf32> to vector<2x1xf32>
    %107 = vector.broadcast %106 : vector<2x1xf32> to vector<2x16xf32>
    %108 = arith.subf %104, %107 : vector<2x16xf32>
    %109 = math.exp %108 : vector<2x16xf32>
    %cst_37 = arith.constant dense<0.000000e+00> : vector<2xf32>
    %110 = vector.multi_reduction <add>, %109, %cst_37 [1] : vector<2x16xf32> to vector<2xf32>
    %111 = vector.shape_cast %110 : vector<2xf32> to vector<2x1xf32>
    %112 = tpu.reciprocal %111 {approx = true} : vector<2x1xf32> -> vector<2x1xf32>
    %113 = vector.broadcast %112 : vector<2x1xf32> to vector<2x16xf32>
    %114 = arith.mulf %109, %113 : vector<2x16xf32>
    %115 = vector.shape_cast %114 : vector<2x16xf32> to vector<2x16x1xf32>
    %116 = vector.broadcast %115 : vector<2x16x1xf32> to vector<2x16x32xf32>
    %117 = arith.mulf %116, %1 : vector<2x16x32xf32>
    %cst_38 = arith.constant dense<0.000000e+00> : vector<2x32xf32>
    %118 = vector.multi_reduction <add>, %117, %cst_38 [1] : vector<2x16x32xf32> to vector<2x32xf32>
    %cst_39 = arith.constant dense<0.000000e+00> : vector<2x128xf32>
    %119 = tpu.matmul %118, %4, %cst_39 {dimension_numbers = #tpu.dot_dimension_numbers<[1], [0], [0], [1], [0, 0, 1, 1], [], []>} : vector<2x32xf32>, vector<32x128xf32>, vector<2x128xf32> -> vector<2x128xf32>
    %120 = arith.addf %98, %119 : vector<2x128xf32>
    %121 = vector.extract_strided_slice %120 {offsets = [0, 0], sizes = [2, 96], strides = [1, 1]} : vector<2x128xf32> to vector<2x96xf32>
    %122 = arith.negf %121 : vector<2x96xf32>
    %123 = math.exp %122 : vector<2x96xf32>
    %cst_40 = arith.constant 1.000000e+00 : f32
    %124 = vector.broadcast %cst_40 : f32 to vector<2x96xf32>
    %125 = arith.addf %124, %123 : vector<2x96xf32>
    %126 = arith.divf %124, %125 : vector<2x96xf32>
    %127 = vector.extract_strided_slice %120 {offsets = [0, 96], sizes = [2, 32], strides = [1, 1]} : vector<2x128xf32> to vector<2x32xf32>
    %128 = math.tanh %127 : vector<2x32xf32>
    %129 = vector.extract_strided_slice %126 {offsets = [0, 0], sizes = [2, 32], strides = [1, 1]} : vector<2x96xf32> to vector<2x32xf32>
    %130 = vector.extract_strided_slice %126 {offsets = [0, 32], sizes = [2, 32], strides = [1, 1]} : vector<2x96xf32> to vector<2x32xf32>
    %131 = vector.extract_strided_slice %126 {offsets = [0, 64], sizes = [2, 32], strides = [1, 1]} : vector<2x96xf32> to vector<2x32xf32>
    %132 = arith.mulf %130, %92 : vector<2x32xf32>
    %133 = arith.mulf %129, %128 : vector<2x32xf32>
    %134 = arith.addf %132, %133 : vector<2x32xf32>
    %135 = math.tanh %134 : vector<2x32xf32>
    %136 = arith.mulf %131, %135 : vector<2x32xf32>
    %c0_41 = arith.constant 0 : index
    %c64 = arith.constant 64 : index
    %137 = vector.load %arg7[%c0_41, %c64] : memref<2x256xf32, #tpu.memory_space<vmem>>, vector<2x32xf32>
    tpu.vector_store %arg7[%c0_41, %c64], %136 {strides = array<i32>} : memref<2x256xf32, #tpu.memory_space<vmem>>, vector<2x32xf32>,
    %cst_42 = arith.constant dense<0.000000e+00> : vector<2x128xf32>
    %138 = tpu.matmul %136, %3, %cst_42 {dimension_numbers = #tpu.dot_dimension_numbers<[1], [0], [0], [1], [0, 0, 1, 1], [], []>} : vector<2x32xf32>, vector<32x128xf32>, vector<2x128xf32> -> vector<2x128xf32>
    %139 = vector.extract_strided_slice %8 {offsets = [6, 0], sizes = [2, 128], strides = [1, 1]} : vector<16x128xf32> to vector<2x128xf32>
    %140 = arith.addf %138, %139 : vector<2x128xf32>
    %141 = vector.shape_cast %136 : vector<2x32xf32> to vector<2x1x32xf32>
    %142 = vector.broadcast %141 : vector<2x1x32xf32> to vector<2x16x32xf32>
    %143 = arith.mulf %142, %1 : vector<2x16x32xf32>
    %cst_43 = arith.constant dense<0.000000e+00> : vector<2x16xf32>
    %144 = vector.multi_reduction <add>, %143, %cst_43 [2] : vector<2x16x32xf32> to vector<2x16xf32>
    %cst_44 = arith.constant 0.176776692 : f32
    %145 = vector.broadcast %cst_44 : f32 to vector<2x16xf32>
    %146 = arith.mulf %144, %145 : vector<2x16xf32>
    %cst_45 = arith.constant dense<0xFF800000> : vector<2xf32>
    %147 = vector.multi_reduction <maximumf>, %146, %cst_45 [1] : vector<2x16xf32> to vector<2xf32>
    %148 = vector.shape_cast %147 : vector<2xf32> to vector<2x1xf32>
    %149 = vector.broadcast %148 : vector<2x1xf32> to vector<2x16xf32>
    %150 = arith.subf %146, %149 : vector<2x16xf32>
    %151 = math.exp %150 : vector<2x16xf32>
    %cst_46 = arith.constant dense<0.000000e+00> : vector<2xf32>
    %152 = vector.multi_reduction <add>, %151, %cst_46 [1] : vector<2x16xf32> to vector<2xf32>
    %153 = vector.shape_cast %152 : vector<2xf32> to vector<2x1xf32>
    %154 = tpu.reciprocal %153 {approx = true} : vector<2x1xf32> -> vector<2x1xf32>
    %155 = vector.broadcast %154 : vector<2x1xf32> to vector<2x16xf32>
    %156 = arith.mulf %151, %155 : vector<2x16xf32>
    %157 = vector.shape_cast %156 : vector<2x16xf32> to vector<2x16x1xf32>
    %158 = vector.broadcast %157 : vector<2x16x1xf32> to vector<2x16x32xf32>
    %159 = arith.mulf %158, %1 : vector<2x16x32xf32>
    %cst_47 = arith.constant dense<0.000000e+00> : vector<2x32xf32>
    %160 = vector.multi_reduction <add>, %159, %cst_47 [1] : vector<2x16x32xf32> to vector<2x32xf32>
    %cst_48 = arith.constant dense<0.000000e+00> : vector<2x128xf32>
    %161 = tpu.matmul %160, %4, %cst_48 {dimension_numbers = #tpu.dot_dimension_numbers<[1], [0], [0], [1], [0, 0, 1, 1], [], []>} : vector<2x32xf32>, vector<32x128xf32>, vector<2x128xf32> -> vector<2x128xf32>
    %162 = arith.addf %140, %161 : vector<2x128xf32>
    %163 = vector.extract_strided_slice %162 {offsets = [0, 0], sizes = [2, 96], strides = [1, 1]} : vector<2x128xf32> to vector<2x96xf32>
    %164 = arith.negf %163 : vector<2x96xf32>
    %165 = math.exp %164 : vector<2x96xf32>
    %cst_49 = arith.constant 1.000000e+00 : f32
    %166 = vector.broadcast %cst_49 : f32 to vector<2x96xf32>
    %167 = arith.addf %166, %165 : vector<2x96xf32>
    %168 = arith.divf %166, %167 : vector<2x96xf32>
    %169 = vector.extract_strided_slice %162 {offsets = [0, 96], sizes = [2, 32], strides = [1, 1]} : vector<2x128xf32> to vector<2x32xf32>
    %170 = math.tanh %169 : vector<2x32xf32>
    %171 = vector.extract_strided_slice %168 {offsets = [0, 0], sizes = [2, 32], strides = [1, 1]} : vector<2x96xf32> to vector<2x32xf32>
    %172 = vector.extract_strided_slice %168 {offsets = [0, 32], sizes = [2, 32], strides = [1, 1]} : vector<2x96xf32> to vector<2x32xf32>
    %173 = vector.extract_strided_slice %168 {offsets = [0, 64], sizes = [2, 32], strides = [1, 1]} : vector<2x96xf32> to vector<2x32xf32>
    %174 = arith.mulf %172, %134 : vector<2x32xf32>
    %175 = arith.mulf %171, %170 : vector<2x32xf32>
    %176 = arith.addf %174, %175 : vector<2x32xf32>
    %177 = math.tanh %176 : vector<2x32xf32>
    %178 = arith.mulf %173, %177 : vector<2x32xf32>
    %c0_50 = arith.constant 0 : index
    %c96 = arith.constant 96 : index
    %179 = vector.load %arg7[%c0_50, %c96] : memref<2x256xf32, #tpu.memory_space<vmem>>, vector<2x32xf32>
    tpu.vector_store %arg7[%c0_50, %c96], %178 {strides = array<i32>} : memref<2x256xf32, #tpu.memory_space<vmem>>, vector<2x32xf32>,
    %cst_51 = arith.constant dense<0.000000e+00> : vector<2x128xf32>
    %180 = tpu.matmul %178, %3, %cst_51 {dimension_numbers = #tpu.dot_dimension_numbers<[1], [0], [0], [1], [0, 0, 1, 1], [], []>} : vector<2x32xf32>, vector<32x128xf32>, vector<2x128xf32> -> vector<2x128xf32>
    %181 = vector.extract_strided_slice %8 {offsets = [8, 0], sizes = [2, 128], strides = [1, 1]} : vector<16x128xf32> to vector<2x128xf32>
    %182 = arith.addf %180, %181 : vector<2x128xf32>
    %183 = vector.shape_cast %178 : vector<2x32xf32> to vector<2x1x32xf32>
    %184 = vector.broadcast %183 : vector<2x1x32xf32> to vector<2x16x32xf32>
    %185 = arith.mulf %184, %1 : vector<2x16x32xf32>
    %cst_52 = arith.constant dense<0.000000e+00> : vector<2x16xf32>
    %186 = vector.multi_reduction <add>, %185, %cst_52 [2] : vector<2x16x32xf32> to vector<2x16xf32>
    %cst_53 = arith.constant 0.176776692 : f32
    %187 = vector.broadcast %cst_53 : f32 to vector<2x16xf32>
    %188 = arith.mulf %186, %187 : vector<2x16xf32>
    %cst_54 = arith.constant dense<0xFF800000> : vector<2xf32>
    %189 = vector.multi_reduction <maximumf>, %188, %cst_54 [1] : vector<2x16xf32> to vector<2xf32>
    %190 = vector.shape_cast %189 : vector<2xf32> to vector<2x1xf32>
    %191 = vector.broadcast %190 : vector<2x1xf32> to vector<2x16xf32>
    %192 = arith.subf %188, %191 : vector<2x16xf32>
    %193 = math.exp %192 : vector<2x16xf32>
    %cst_55 = arith.constant dense<0.000000e+00> : vector<2xf32>
    %194 = vector.multi_reduction <add>, %193, %cst_55 [1] : vector<2x16xf32> to vector<2xf32>
    %195 = vector.shape_cast %194 : vector<2xf32> to vector<2x1xf32>
    %196 = tpu.reciprocal %195 {approx = true} : vector<2x1xf32> -> vector<2x1xf32>
    %197 = vector.broadcast %196 : vector<2x1xf32> to vector<2x16xf32>
    %198 = arith.mulf %193, %197 : vector<2x16xf32>
    %199 = vector.shape_cast %198 : vector<2x16xf32> to vector<2x16x1xf32>
    %200 = vector.broadcast %199 : vector<2x16x1xf32> to vector<2x16x32xf32>
    %201 = arith.mulf %200, %1 : vector<2x16x32xf32>
    %cst_56 = arith.constant dense<0.000000e+00> : vector<2x32xf32>
    %202 = vector.multi_reduction <add>, %201, %cst_56 [1] : vector<2x16x32xf32> to vector<2x32xf32>
    %cst_57 = arith.constant dense<0.000000e+00> : vector<2x128xf32>
    %203 = tpu.matmul %202, %4, %cst_57 {dimension_numbers = #tpu.dot_dimension_numbers<[1], [0], [0], [1], [0, 0, 1, 1], [], []>} : vector<2x32xf32>, vector<32x128xf32>, vector<2x128xf32> -> vector<2x128xf32>
    %204 = arith.addf %182, %203 : vector<2x128xf32>
    %205 = vector.extract_strided_slice %204 {offsets = [0, 0], sizes = [2, 96], strides = [1, 1]} : vector<2x128xf32> to vector<2x96xf32>
    %206 = arith.negf %205 : vector<2x96xf32>
    %207 = math.exp %206 : vector<2x96xf32>
    %cst_58 = arith.constant 1.000000e+00 : f32
    %208 = vector.broadcast %cst_58 : f32 to vector<2x96xf32>
    %209 = arith.addf %208, %207 : vector<2x96xf32>
    %210 = arith.divf %208, %209 : vector<2x96xf32>
    %211 = vector.extract_strided_slice %204 {offsets = [0, 96], sizes = [2, 32], strides = [1, 1]} : vector<2x128xf32> to vector<2x32xf32>
    %212 = math.tanh %211 : vector<2x32xf32>
    %213 = vector.extract_strided_slice %210 {offsets = [0, 0], sizes = [2, 32], strides = [1, 1]} : vector<2x96xf32> to vector<2x32xf32>
    %214 = vector.extract_strided_slice %210 {offsets = [0, 32], sizes = [2, 32], strides = [1, 1]} : vector<2x96xf32> to vector<2x32xf32>
    %215 = vector.extract_strided_slice %210 {offsets = [0, 64], sizes = [2, 32], strides = [1, 1]} : vector<2x96xf32> to vector<2x32xf32>
    %216 = arith.mulf %214, %176 : vector<2x32xf32>
    %217 = arith.mulf %213, %212 : vector<2x32xf32>
    %218 = arith.addf %216, %217 : vector<2x32xf32>
    %219 = math.tanh %218 : vector<2x32xf32>
    %220 = arith.mulf %215, %219 : vector<2x32xf32>
    %c0_59 = arith.constant 0 : index
    %c128 = arith.constant 128 : index
    %221 = vector.load %arg7[%c0_59, %c128] : memref<2x256xf32, #tpu.memory_space<vmem>>, vector<2x32xf32>
    tpu.vector_store %arg7[%c0_59, %c128], %220 {strides = array<i32>} : memref<2x256xf32, #tpu.memory_space<vmem>>, vector<2x32xf32>,
    %cst_60 = arith.constant dense<0.000000e+00> : vector<2x128xf32>
    %222 = tpu.matmul %220, %3, %cst_60 {dimension_numbers = #tpu.dot_dimension_numbers<[1], [0], [0], [1], [0, 0, 1, 1], [], []>} : vector<2x32xf32>, vector<32x128xf32>, vector<2x128xf32> -> vector<2x128xf32>
    %223 = vector.extract_strided_slice %8 {offsets = [10, 0], sizes = [2, 128], strides = [1, 1]} : vector<16x128xf32> to vector<2x128xf32>
    %224 = arith.addf %222, %223 : vector<2x128xf32>
    %225 = vector.shape_cast %220 : vector<2x32xf32> to vector<2x1x32xf32>
    %226 = vector.broadcast %225 : vector<2x1x32xf32> to vector<2x16x32xf32>
    %227 = arith.mulf %226, %1 : vector<2x16x32xf32>
    %cst_61 = arith.constant dense<0.000000e+00> : vector<2x16xf32>
    %228 = vector.multi_reduction <add>, %227, %cst_61 [2] : vector<2x16x32xf32> to vector<2x16xf32>
    %cst_62 = arith.constant 0.176776692 : f32
    %229 = vector.broadcast %cst_62 : f32 to vector<2x16xf32>
    %230 = arith.mulf %228, %229 : vector<2x16xf32>
    %cst_63 = arith.constant dense<0xFF800000> : vector<2xf32>
    %231 = vector.multi_reduction <maximumf>, %230, %cst_63 [1] : vector<2x16xf32> to vector<2xf32>
    %232 = vector.shape_cast %231 : vector<2xf32> to vector<2x1xf32>
    %233 = vector.broadcast %232 : vector<2x1xf32> to vector<2x16xf32>
    %234 = arith.subf %230, %233 : vector<2x16xf32>
    %235 = math.exp %234 : vector<2x16xf32>
    %cst_64 = arith.constant dense<0.000000e+00> : vector<2xf32>
    %236 = vector.multi_reduction <add>, %235, %cst_64 [1] : vector<2x16xf32> to vector<2xf32>
    %237 = vector.shape_cast %236 : vector<2xf32> to vector<2x1xf32>
    %238 = tpu.reciprocal %237 {approx = true} : vector<2x1xf32> -> vector<2x1xf32>
    %239 = vector.broadcast %238 : vector<2x1xf32> to vector<2x16xf32>
    %240 = arith.mulf %235, %239 : vector<2x16xf32>
    %241 = vector.shape_cast %240 : vector<2x16xf32> to vector<2x16x1xf32>
    %242 = vector.broadcast %241 : vector<2x16x1xf32> to vector<2x16x32xf32>
    %243 = arith.mulf %242, %1 : vector<2x16x32xf32>
    %cst_65 = arith.constant dense<0.000000e+00> : vector<2x32xf32>
    %244 = vector.multi_reduction <add>, %243, %cst_65 [1] : vector<2x16x32xf32> to vector<2x32xf32>
    %cst_66 = arith.constant dense<0.000000e+00> : vector<2x128xf32>
    %245 = tpu.matmul %244, %4, %cst_66 {dimension_numbers = #tpu.dot_dimension_numbers<[1], [0], [0], [1], [0, 0, 1, 1], [], []>} : vector<2x32xf32>, vector<32x128xf32>, vector<2x128xf32> -> vector<2x128xf32>
    %246 = arith.addf %224, %245 : vector<2x128xf32>
    %247 = vector.extract_strided_slice %246 {offsets = [0, 0], sizes = [2, 96], strides = [1, 1]} : vector<2x128xf32> to vector<2x96xf32>
    %248 = arith.negf %247 : vector<2x96xf32>
    %249 = math.exp %248 : vector<2x96xf32>
    %cst_67 = arith.constant 1.000000e+00 : f32
    %250 = vector.broadcast %cst_67 : f32 to vector<2x96xf32>
    %251 = arith.addf %250, %249 : vector<2x96xf32>
    %252 = arith.divf %250, %251 : vector<2x96xf32>
    %253 = vector.extract_strided_slice %246 {offsets = [0, 96], sizes = [2, 32], strides = [1, 1]} : vector<2x128xf32> to vector<2x32xf32>
    %254 = math.tanh %253 : vector<2x32xf32>
    %255 = vector.extract_strided_slice %252 {offsets = [0, 0], sizes = [2, 32], strides = [1, 1]} : vector<2x96xf32> to vector<2x32xf32>
    %256 = vector.extract_strided_slice %252 {offsets = [0, 32], sizes = [2, 32], strides = [1, 1]} : vector<2x96xf32> to vector<2x32xf32>
    %257 = vector.extract_strided_slice %252 {offsets = [0, 64], sizes = [2, 32], strides = [1, 1]} : vector<2x96xf32> to vector<2x32xf32>
    %258 = arith.mulf %256, %218 : vector<2x32xf32>
    %259 = arith.mulf %255, %254 : vector<2x32xf32>
    %260 = arith.addf %258, %259 : vector<2x32xf32>
    %261 = math.tanh %260 : vector<2x32xf32>
    %262 = arith.mulf %257, %261 : vector<2x32xf32>
    %c0_68 = arith.constant 0 : index
    %c160 = arith.constant 160 : index
    %263 = vector.load %arg7[%c0_68, %c160] : memref<2x256xf32, #tpu.memory_space<vmem>>, vector<2x32xf32>
    tpu.vector_store %arg7[%c0_68, %c160], %262 {strides = array<i32>} : memref<2x256xf32, #tpu.memory_space<vmem>>, vector<2x32xf32>,
    %cst_69 = arith.constant dense<0.000000e+00> : vector<2x128xf32>
    %264 = tpu.matmul %262, %3, %cst_69 {dimension_numbers = #tpu.dot_dimension_numbers<[1], [0], [0], [1], [0, 0, 1, 1], [], []>} : vector<2x32xf32>, vector<32x128xf32>, vector<2x128xf32> -> vector<2x128xf32>
    %265 = vector.extract_strided_slice %8 {offsets = [12, 0], sizes = [2, 128], strides = [1, 1]} : vector<16x128xf32> to vector<2x128xf32>
    %266 = arith.addf %264, %265 : vector<2x128xf32>
    %267 = vector.shape_cast %262 : vector<2x32xf32> to vector<2x1x32xf32>
    %268 = vector.broadcast %267 : vector<2x1x32xf32> to vector<2x16x32xf32>
    %269 = arith.mulf %268, %1 : vector<2x16x32xf32>
    %cst_70 = arith.constant dense<0.000000e+00> : vector<2x16xf32>
    %270 = vector.multi_reduction <add>, %269, %cst_70 [2] : vector<2x16x32xf32> to vector<2x16xf32>
    %cst_71 = arith.constant 0.176776692 : f32
    %271 = vector.broadcast %cst_71 : f32 to vector<2x16xf32>
    %272 = arith.mulf %270, %271 : vector<2x16xf32>
    %cst_72 = arith.constant dense<0xFF800000> : vector<2xf32>
    %273 = vector.multi_reduction <maximumf>, %272, %cst_72 [1] : vector<2x16xf32> to vector<2xf32>
    %274 = vector.shape_cast %273 : vector<2xf32> to vector<2x1xf32>
    %275 = vector.broadcast %274 : vector<2x1xf32> to vector<2x16xf32>
    %276 = arith.subf %272, %275 : vector<2x16xf32>
    %277 = math.exp %276 : vector<2x16xf32>
    %cst_73 = arith.constant dense<0.000000e+00> : vector<2xf32>
    %278 = vector.multi_reduction <add>, %277, %cst_73 [1] : vector<2x16xf32> to vector<2xf32>
    %279 = vector.shape_cast %278 : vector<2xf32> to vector<2x1xf32>
    %280 = tpu.reciprocal %279 {approx = true} : vector<2x1xf32> -> vector<2x1xf32>
    %281 = vector.broadcast %280 : vector<2x1xf32> to vector<2x16xf32>
    %282 = arith.mulf %277, %281 : vector<2x16xf32>
    %283 = vector.shape_cast %282 : vector<2x16xf32> to vector<2x16x1xf32>
    %284 = vector.broadcast %283 : vector<2x16x1xf32> to vector<2x16x32xf32>
    %285 = arith.mulf %284, %1 : vector<2x16x32xf32>
    %cst_74 = arith.constant dense<0.000000e+00> : vector<2x32xf32>
    %286 = vector.multi_reduction <add>, %285, %cst_74 [1] : vector<2x16x32xf32> to vector<2x32xf32>
    %cst_75 = arith.constant dense<0.000000e+00> : vector<2x128xf32>
    %287 = tpu.matmul %286, %4, %cst_75 {dimension_numbers = #tpu.dot_dimension_numbers<[1], [0], [0], [1], [0, 0, 1, 1], [], []>} : vector<2x32xf32>, vector<32x128xf32>, vector<2x128xf32> -> vector<2x128xf32>
    %288 = arith.addf %266, %287 : vector<2x128xf32>
    %289 = vector.extract_strided_slice %288 {offsets = [0, 0], sizes = [2, 96], strides = [1, 1]} : vector<2x128xf32> to vector<2x96xf32>
    %290 = arith.negf %289 : vector<2x96xf32>
    %291 = math.exp %290 : vector<2x96xf32>
    %cst_76 = arith.constant 1.000000e+00 : f32
    %292 = vector.broadcast %cst_76 : f32 to vector<2x96xf32>
    %293 = arith.addf %292, %291 : vector<2x96xf32>
    %294 = arith.divf %292, %293 : vector<2x96xf32>
    %295 = vector.extract_strided_slice %288 {offsets = [0, 96], sizes = [2, 32], strides = [1, 1]} : vector<2x128xf32> to vector<2x32xf32>
    %296 = math.tanh %295 : vector<2x32xf32>
    %297 = vector.extract_strided_slice %294 {offsets = [0, 0], sizes = [2, 32], strides = [1, 1]} : vector<2x96xf32> to vector<2x32xf32>
    %298 = vector.extract_strided_slice %294 {offsets = [0, 32], sizes = [2, 32], strides = [1, 1]} : vector<2x96xf32> to vector<2x32xf32>
    %299 = vector.extract_strided_slice %294 {offsets = [0, 64], sizes = [2, 32], strides = [1, 1]} : vector<2x96xf32> to vector<2x32xf32>
    %300 = arith.mulf %298, %260 : vector<2x32xf32>
    %301 = arith.mulf %297, %296 : vector<2x32xf32>
    %302 = arith.addf %300, %301 : vector<2x32xf32>
    %303 = math.tanh %302 : vector<2x32xf32>
    %304 = arith.mulf %299, %303 : vector<2x32xf32>
    %c0_77 = arith.constant 0 : index
    %c192 = arith.constant 192 : index
    %305 = vector.load %arg7[%c0_77, %c192] : memref<2x256xf32, #tpu.memory_space<vmem>>, vector<2x32xf32>
    tpu.vector_store %arg7[%c0_77, %c192], %304 {strides = array<i32>} : memref<2x256xf32, #tpu.memory_space<vmem>>, vector<2x32xf32>,
    %cst_78 = arith.constant dense<0.000000e+00> : vector<2x128xf32>
    %306 = tpu.matmul %304, %3, %cst_78 {dimension_numbers = #tpu.dot_dimension_numbers<[1], [0], [0], [1], [0, 0, 1, 1], [], []>} : vector<2x32xf32>, vector<32x128xf32>, vector<2x128xf32> -> vector<2x128xf32>
    %307 = vector.extract_strided_slice %8 {offsets = [14, 0], sizes = [2, 128], strides = [1, 1]} : vector<16x128xf32> to vector<2x128xf32>
    %308 = arith.addf %306, %307 : vector<2x128xf32>
    %309 = vector.shape_cast %304 : vector<2x32xf32> to vector<2x1x32xf32>
    %310 = vector.broadcast %309 : vector<2x1x32xf32> to vector<2x16x32xf32>
    %311 = arith.mulf %310, %1 : vector<2x16x32xf32>
    %cst_79 = arith.constant dense<0.000000e+00> : vector<2x16xf32>
    %312 = vector.multi_reduction <add>, %311, %cst_79 [2] : vector<2x16x32xf32> to vector<2x16xf32>
    %cst_80 = arith.constant 0.176776692 : f32
    %313 = vector.broadcast %cst_80 : f32 to vector<2x16xf32>
    %314 = arith.mulf %312, %313 : vector<2x16xf32>
    %cst_81 = arith.constant dense<0xFF800000> : vector<2xf32>
    %315 = vector.multi_reduction <maximumf>, %314, %cst_81 [1] : vector<2x16xf32> to vector<2xf32>
    %316 = vector.shape_cast %315 : vector<2xf32> to vector<2x1xf32>
    %317 = vector.broadcast %316 : vector<2x1xf32> to vector<2x16xf32>
    %318 = arith.subf %314, %317 : vector<2x16xf32>
    %319 = math.exp %318 : vector<2x16xf32>
    %cst_82 = arith.constant dense<0.000000e+00> : vector<2xf32>
    %320 = vector.multi_reduction <add>, %319, %cst_82 [1] : vector<2x16xf32> to vector<2xf32>
    %321 = vector.shape_cast %320 : vector<2xf32> to vector<2x1xf32>
    %322 = tpu.reciprocal %321 {approx = true} : vector<2x1xf32> -> vector<2x1xf32>
    %323 = vector.broadcast %322 : vector<2x1xf32> to vector<2x16xf32>
    %324 = arith.mulf %319, %323 : vector<2x16xf32>
    %325 = vector.shape_cast %324 : vector<2x16xf32> to vector<2x16x1xf32>
    %326 = vector.broadcast %325 : vector<2x16x1xf32> to vector<2x16x32xf32>
    %327 = arith.mulf %326, %1 : vector<2x16x32xf32>
    %cst_83 = arith.constant dense<0.000000e+00> : vector<2x32xf32>
    %328 = vector.multi_reduction <add>, %327, %cst_83 [1] : vector<2x16x32xf32> to vector<2x32xf32>
    %cst_84 = arith.constant dense<0.000000e+00> : vector<2x128xf32>
    %329 = tpu.matmul %328, %4, %cst_84 {dimension_numbers = #tpu.dot_dimension_numbers<[1], [0], [0], [1], [0, 0, 1, 1], [], []>} : vector<2x32xf32>, vector<32x128xf32>, vector<2x128xf32> -> vector<2x128xf32>
    %330 = arith.addf %308, %329 : vector<2x128xf32>
    %331 = vector.extract_strided_slice %330 {offsets = [0, 0], sizes = [2, 96], strides = [1, 1]} : vector<2x128xf32> to vector<2x96xf32>
    %332 = arith.negf %331 : vector<2x96xf32>
    %333 = math.exp %332 : vector<2x96xf32>
    %cst_85 = arith.constant 1.000000e+00 : f32
    %334 = vector.broadcast %cst_85 : f32 to vector<2x96xf32>
    %335 = arith.addf %334, %333 : vector<2x96xf32>
    %336 = arith.divf %334, %335 : vector<2x96xf32>
    %337 = vector.extract_strided_slice %330 {offsets = [0, 96], sizes = [2, 32], strides = [1, 1]} : vector<2x128xf32> to vector<2x32xf32>
    %338 = math.tanh %337 : vector<2x32xf32>
    %339 = vector.extract_strided_slice %336 {offsets = [0, 0], sizes = [2, 32], strides = [1, 1]} : vector<2x96xf32> to vector<2x32xf32>
    %340 = vector.extract_strided_slice %336 {offsets = [0, 32], sizes = [2, 32], strides = [1, 1]} : vector<2x96xf32> to vector<2x32xf32>
    %341 = vector.extract_strided_slice %336 {offsets = [0, 64], sizes = [2, 32], strides = [1, 1]} : vector<2x96xf32> to vector<2x32xf32>
    %342 = arith.mulf %340, %302 : vector<2x32xf32>
    %343 = arith.mulf %339, %338 : vector<2x32xf32>
    %344 = arith.addf %342, %343 : vector<2x32xf32>
    %345 = math.tanh %344 : vector<2x32xf32>
    %346 = arith.mulf %341, %345 : vector<2x32xf32>
    %c0_86 = arith.constant 0 : index
    %c224 = arith.constant 224 : index
    %347 = vector.load %arg7[%c0_86, %c224] : memref<2x256xf32, #tpu.memory_space<vmem>>, vector<2x32xf32>
    tpu.vector_store %arg7[%c0_86, %c224], %346 {strides = array<i32>} : memref<2x256xf32, #tpu.memory_space<vmem>>, vector<2x32xf32>,
    return
  }
  func.func @transform_0(%arg0: i32) -> (i32, i32) {
    %c0_i32 = arith.constant 0 : i32
    %c0_i32_0 = arith.constant 0 : i32
    %c0_i32_1 = arith.constant 0 : i32
    return %c0_i32, %c0_i32_0 : i32, i32
  }
  func.func @transform_1(%arg0: i32) -> (i32, i32, i32) {
    %c0_i32 = arith.constant 0 : i32
    %c0_i32_0 = arith.constant 0 : i32
    %c0_i32_1 = arith.constant 0 : i32
    %c0_i32_2 = arith.constant 0 : i32
    return %c0_i32, %c0_i32_0, %c0_i32_1 : i32, i32, i32
  }
  func.func @transform_2(%arg0: i32) -> (i32, i32) {
    %c0_i32 = arith.constant 0 : i32
    %c0_i32_0 = arith.constant 0 : i32
    %c0_i32_1 = arith.constant 0 : i32
    return %c0_i32, %c0_i32_0 : i32, i32
  }
  func.func @transform_3(%arg0: i32) -> (i32, i32) {
    %c0_i32 = arith.constant 0 : i32
    %c0_i32_0 = arith.constant 0 : i32
    %c0_i32_1 = arith.constant 0 : i32
    return %c0_i32, %c0_i32_0 : i32, i32
  }
  func.func @transform_4(%arg0: i32) -> (i32, i32) {
    %c0_i32 = arith.constant 0 : i32
    %c0_i32_0 = arith.constant 0 : i32
    %c0_i32_1 = arith.constant 0 : i32
    return %c0_i32, %c0_i32_0 : i32, i32
  }
  func.func @transform_5(%arg0: i32) -> (i32, i32) {
    %c0_i32 = arith.constant 0 : i32
    %c0_i32_0 = arith.constant 0 : i32
    %c0_i32_1 = arith.constant 0 : i32
    return %c0_i32, %c0_i32_0 : i32, i32
  }
  func.func @transform_6(%arg0: i32) -> (i32, i32) {
    %c0_i32 = arith.constant 0 : i32
    %c0_i32_0 = arith.constant 0 : i32
    %c0_i32_1 = arith.constant 0 : i32
    return %c0_i32, %c0_i32_0 : i32, i32
  }
}

</mosaic_0001>

<llo_original>
// kernel: tpu_custom_call.1
$region0: #{tpu_custom_call.1}
  #allocation0 [shape = 'u32[]', space=smem, size = 0x4, offset = 0x4, fixed_abs, tag = 'smem constant byte address 0x4 - core index']
  #allocation1 [shape = 'u32[72,128]{1,0:T(1,128)}', space=vmem, size = 0x9000, scoped, tag = 'internal scratch']
  %s0 = inlined_call_operand.hbm [shape: f32[16,32], index: 0, kind: input, shape index: {}]
  %s1 = inlined_call_operand.hbm [shape: f32[2,16,32], index: 1, kind: input, shape index: {}]
  %s2 = inlined_call_operand.hbm [shape: f32[32,128], index: 2, kind: input, shape index: {}]
  %s3 = inlined_call_operand.hbm [shape: f32[32,128], index: 3, kind: input, shape index: {}]
  %s4 = inlined_call_operand.hbm [shape: f32[32,128], index: 4, kind: input, shape index: {}]
  %s5 = inlined_call_operand.vmem [shape: f32[1,128], index: 5, kind: input, shape index: {}]
  %s6 = inlined_call_operand.hbm [shape: f32[2,256], index: 6, kind: output, shape index: {}]
  %s7 = sld [smem:[#allocation0]]
  $region54: #{tpu_custom_call.1} parent=0
    _
  %s9 = ssub.s32 1, %s7
  %s10 = scalar_select 0, %s9, %s7
  $region1: #{tpu_custom_call.1} parent=0
    #allocation2 [shape = 'u8[8192]{0}', space=vmem, size = 0x2000, scoped, tag = 'input window, operand 0, single buffered']
    #allocation3 [shape = 's32[1]{0}', space=sflag, size = 0x4, scoped, tag = 'scoped memory for tpu_custom_call.1']
    #allocation4 [shape = 's32[1]{0}', space=sflag, size = 0x4, scoped, tag = 'scoped memory for tpu_custom_call.1']
    #allocation5 [shape = 'u8[16384]{0}', space=vmem, size = 0x4000, scoped, tag = 'input window, operand 1, single buffered']
    #allocation6 [shape = 's32[1]{0}', space=sflag, size = 0x4, scoped, tag = 'scoped memory for tpu_custom_call.1']
    #allocation7 [shape = 'u8[16384]{0}', space=vmem, size = 0x4000, scoped, tag = 'input window, operand 2, single buffered']
    #allocation8 [shape = 'u8[16384]{0}', space=vmem, size = 0x4000, scoped, tag = 'input window, operand 3, single buffered']
    #allocation9 [shape = 's32[1]{0}', space=sflag, size = 0x4, scoped, tag = 'scoped memory for tpu_custom_call.1']
    #allocation10 [shape = 'u8[16384]{0}', space=vmem, size = 0x4000, scoped, tag = 'input window, operand 4, single buffered']
    #allocation11 [shape = 'u8[2048]{0}', space=vmem, size = 0x800, scoped, tag = 'output window, operand 0, single buffered']
    %11 = vsyncpa [#allocation3], 0
    %12 = vsyncpa [#allocation6], 0
    %13 = vsyncpa [#allocation9], 0
    %14 = vsyncpa [#allocation4], 0
    // Predicated region
    $region2: #{tpu_custom_call.1} parent=1 // pred_check
      _
    $region3: #{tpu_custom_call.1} parent=1 // pred_check_branch
      %16 = sbr.rel (0) target = $region5
    $region4: #{tpu_custom_call.1} parent=1 // pred_region
      %18 = vsyncadd [#allocation3], 0
      %s19 = sshll.u32 %s0, 4
      %s20 = int_to_ptr.hbm [resolvable:$true] %s19
      %s21 = sshll.u32 [#allocation2], 4
      %s22 = int_to_ptr.vmem [resolvable:$true] %s21
      %27 = dma.hbm_to_vmem [thread:$0]  %s20, 256, %s22, [#allocation3], 128, 128, 8
    $region5: #{tpu_custom_call.1} parent=1 // pred_fallthru
      _
    // Predicated region
    $region6: #{tpu_custom_call.1} parent=1 // pred_check
      _
    $region7: #{tpu_custom_call.1} parent=1 // pred_check_branch
      %29 = sbr.rel (0) target = $region9
    $region8: #{tpu_custom_call.1} parent=1 // pred_region
      %31 = vsyncadd [#allocation6], 0
      %s32 = sshll.u32 %s1, 4
      %s33 = int_to_ptr.hbm [resolvable:$true] %s32
      %s34 = sshll.u32 [#allocation5], 4
      %s35 = int_to_ptr.vmem [resolvable:$true] %s34
      %40 = dma.hbm_to_vmem [thread:$0]  %s33, 512, %s35, [#allocation6], 128, 128, 8
    $region9: #{tpu_custom_call.1} parent=1 // pred_fallthru
      _
    // Predicated region
    $region10: #{tpu_custom_call.1} parent=1 // pred_check
      _
    $region11: #{tpu_custom_call.1} parent=1 // pred_check_branch
      %42 = sbr.rel (0) target = $region13
    $region12: #{tpu_custom_call.1} parent=1 // pred_region
      %44 = vsyncadd [#allocation6], 0
      %s45 = sshll.u32 %s2, 4
      %s46 = int_to_ptr.hbm [resolvable:$true] %s45
      %s47 = sshll.u32 [#allocation7], 4
      %s48 = int_to_ptr.vmem [resolvable:$true] %s47
      %53 = dma.hbm_to_vmem [thread:$0]  %s46, 512, %s48, [#allocation6], 128, 128, 8
    $region13: #{tpu_custom_call.1} parent=1 // pred_fallthru
      _
    // Predicated region
    $region14: #{tpu_custom_call.1} parent=1 // pred_check
      _
    $region15: #{tpu_custom_call.1} parent=1 // pred_check_branch
      %55 = sbr.rel (0) target = $region17
    $region16: #{tpu_custom_call.1} parent=1 // pred_region
      %57 = vsyncadd [#allocation9], 0
      %s58 = sshll.u32 %s3, 4
      %s59 = int_to_ptr.hbm [resolvable:$true] %s58
      %s60 = sshll.u32 [#allocation8], 4
      %s61 = int_to_ptr.vmem [resolvable:$true] %s60
      %66 = dma.hbm_to_vmem [thread:$0]  %s59, 512, %s61, [#allocation9], 128, 128, 8
    $region17: #{tpu_custom_call.1} parent=1 // pred_fallthru
      _
    // Predicated region
    $region18: #{tpu_custom_call.1} parent=1 // pred_check
      _
    $region19: #{tpu_custom_call.1} parent=1 // pred_check_branch
      %68 = sbr.rel (0) target = $region21
    $region20: #{tpu_custom_call.1} parent=1 // pred_region
      %70 = vsyncadd [#allocation9], 0
      %s71 = sshll.u32 %s4, 4
      %s72 = int_to_ptr.hbm [resolvable:$true] %s71
      %s73 = sshll.u32 [#allocation10], 4
      %s74 = int_to_ptr.vmem [resolvable:$true] %s73
      %79 = dma.hbm_to_vmem [thread:$0]  %s72, 512, %s74, [#allocation9], 128, 128, 8
    $region21: #{tpu_custom_call.1} parent=1 // pred_fallthru
      _
    // Predicated region
    $region22: #{tpu_custom_call.1} parent=1 // pred_check
      _
    $region23: #{tpu_custom_call.1} parent=1 // pred_check_branch
      %81 = sbr.rel (0) target = $region25
    $region24: #{tpu_custom_call.1} parent=1 // pred_region
      _
    $region25: #{tpu_custom_call.1} parent=1 // pred_fallthru
      _
    // Predicated region
    $region26: #{tpu_custom_call.1} parent=1 // pred_check
      _
    $region27: #{tpu_custom_call.1} parent=1 // pred_check_branch
      %83 = sbr.rel (0) target = $region29
    $region28: #{tpu_custom_call.1} parent=1 // pred_region
      %85 = dma.done [#allocation3], 256
    $region29: #{tpu_custom_call.1} parent=1 // pred_fallthru
      _
    // Predicated region
    $region30: #{tpu_custom_call.1} parent=1 // pred_check
      _
    $region31: #{tpu_custom_call.1} parent=1 // pred_check_branch
      %87 = sbr.rel (0) target = $region33
    $region32: #{tpu_custom_call.1} parent=1 // pred_region
      %89 = dma.done [#allocation6], 512
    $region33: #{tpu_custom_call.1} parent=1 // pred_fallthru
      _
    // Predicated region
    $region34: #{tpu_custom_call.1} parent=1 // pred_check
      _
    $region35: #{tpu_custom_call.1} parent=1 // pred_check_branch
      %91 = sbr.rel (0) target = $region37
    $region36: #{tpu_custom_call.1} parent=1 // pred_region
      %93 = dma.done [#allocation6], 512
    $region37: #{tpu_custom_call.1} parent=1 // pred_fallthru
      _
    // Predicated region
    $region38: #{tpu_custom_call.1} parent=1 // pred_check
      _
    $region39: #{tpu_custom_call.1} parent=1 // pred_check_branch
      %95 = sbr.rel (0) target = $region41
    $region40: #{tpu_custom_call.1} parent=1 // pred_region
      %97 = dma.done [#allocation9], 512
    $region41: #{tpu_custom_call.1} parent=1 // pred_fallthru
      _
    // Predicated region
    $region42: #{tpu_custom_call.1} parent=1 // pred_check
      _
    $region43: #{tpu_custom_call.1} parent=1 // pred_check_branch
      %99 = sbr.rel (0) target = $region45
    $region44: #{tpu_custom_call.1} parent=1 // pred_region
      %101 = dma.done [#allocation9], 512
    $region45: #{tpu_custom_call.1} parent=1 // pred_fallthru
      _
    %v102 = vld [vmem:[#allocation2] sm:$0xff]
    %v103 = vld [vmem:[#allocation2 + $0x8] sm:$0xff]
    %v104 = vld [vmem:[#allocation5] sm:$0xff]
    %v105 = vld [vmem:[#allocation5 + $0x8] sm:$0xff]
    %v106 = vld [vmem:[#allocation5 + $0x10] sm:$0xff]
    %v107 = vld [vmem:[#allocation5 + $0x18] sm:$0xff]
    %v108 = vld [vmem:[#allocation7] sm:$0xff]
    %v109 = vld [vmem:[#allocation7 + $0x8] sm:$0xff]
    %v110 = vld [vmem:[#allocation7 + $0x10] sm:$0xff]
    %v111 = vld [vmem:[#allocation7 + $0x18] sm:$0xff]
    %v112 = vld [vmem:[#allocation8] sm:$0xff]
    %v113 = vld [vmem:[#allocation8 + $0x8] sm:$0xff]
    %v114 = vld [vmem:[#allocation8 + $0x10] sm:$0xff]
    %v115 = vld [vmem:[#allocation8 + $0x18] sm:$0xff]
    %v116 = vld [vmem:[#allocation10] sm:$0xff]
    %v117 = vld [vmem:[#allocation10 + $0x8] sm:$0xff]
    %v118 = vld [vmem:[#allocation10 + $0x10] sm:$0xff]
    %v119 = vld [vmem:[#allocation10 + $0x18] sm:$0xff]
    %v120 = vld [vmem:[%s5] sm:$0x1]
    %v122 = vperm.slane %v120, 0
    %vm124 = vcmask 261120
    %v126 = vsel %vm124, %v102, 0
    %v129 = vsel %vm124, %v103, 0
    %131 = vmatpush.msra.mxu0 0.0
    %132 = vmatpush.msra.mxu0 0.0
    %133 = vmatpush.msra.mxu0 0.0
    %134 = vmatpush.msra.mxu0 0.0
    %135 = vmatpush.msra.mxu0 0.0
    %136 = vmatpush.msra.mxu0 0.0
    %137 = vmatpush.msra.mxu0 0.0
    %138 = vmatpush.msra.mxu0 0.0
    %139 = vmatpush.msra.mxu0 0.0
    %140 = vmatpush.msra.mxu0 0.0
    %141 = vmatpush.msra.mxu0 0.0
    %142 = vmatpush.msra.mxu0 0.0
    %143 = vmatpush.msra.mxu0 %v111
    %144 = vmatpush.msra.mxu0 %v110
    %145 = vmatpush.msra.mxu0 %v109
    %146 = vmatpush.msra.mxu0 %v108
    %147 = vmatmul.f32.gmra.mxu0 %v126
    %v148 = vpop.f32.mrf.mxu0
    %v149 = vadd.f32 %v122, %v148
    %150 = vmatmul.f32.gmra.mxu0 %v129
    %v151 = vpop.f32.mrf.mxu0
    %v152 = vadd.f32 %v122, %v151
    %153 = vdwg.mxu0
    %v154 = vsel %vm124, %v104, 0.0
    %v155 = vsel %vm124, %v105, 0.0
    %v156 = vadd.f32 %v154, %v155
    %v157 = vrot.slane %v156, 4
    %v158 = vadd.f32 %v156, %v157
    %v159 = vrot.slane %v158, 2
    %v160 = vadd.f32 %v158, %v159
    %v161 = vrot.slane %v160, 1
    %v162 = vadd.f32 %v160, %v161
    %v163 = vsel %vm124, %v106, 0.0
    %v164 = vsel %vm124, %v107, 0.0
    %v165 = vadd.f32 %v163, %v164
    %v166 = vrot.slane %v165, 4
    %v167 = vadd.f32 %v165, %v166
    %v168 = vrot.slane %v167, 2
    %v169 = vadd.f32 %v167, %v168
    %v170 = vrot.slane %v169, 1
    %v171 = vadd.f32 %v169, %v170
    %v172 = vrcp.pop 16.0
    %v173 = vmul.f32 16.0, %v172
    %v174 = vsub.f32 1.0, %v173
    %v175 = vmul.f32 %v172, %v174
    %v176 = vadd.f32 %v172, %v175
    %vm177 = vweird.f32 %v172
    %v178 = vsel %vm177, %v172, %v176
    %v179 = vmul.f32 %v162, %v178
    %v180 = vmul.f32 %v171, %v178
    %vm183 = vcmask 1041409
    %v184 = vsel %vm183, %v180, %v179
    %v185 = vsel %vm124, %v184, 0
    %187 = vmatpush.msra.mxu0 0.0
    %188 = vmatpush.msra.mxu0 0.0
    %189 = vmatpush.msra.mxu0 0.0
    %190 = vmatpush.msra.mxu0 0.0
    %191 = vmatpush.msra.mxu0 0.0
    %192 = vmatpush.msra.mxu0 0.0
    %193 = vmatpush.msra.mxu0 0.0
    %194 = vmatpush.msra.mxu0 0.0
    %195 = vmatpush.msra.mxu0 0.0
    %196 = vmatpush.msra.mxu0 0.0
    %197 = vmatpush.msra.mxu0 0.0
    %198 = vmatpush.msra.mxu0 0.0
    %199 = vmatpush.msra.mxu0 %v115
    %200 = vmatpush.msra.mxu0 %v114
    %201 = vmatpush.msra.mxu0 %v113
    %202 = vmatpush.msra.mxu0 %v112
    %203 = vmatmul.f32.gmra.mxu0 %v185
    %v204 = vpop.f32.mrf.mxu0
    %v205 = vadd.f32 %v149, %v204
    %206 = vdwg.mxu0
    %v207 = vmul.f32 %v179, %v104
    %v208 = vmul.f32 %v179, %v105
    %v209 = vmul.f32 %v180, %v106
    %v210 = vmul.f32 %v180, %v107
    %v211 = vsel %vm124, %v207, 0.0
    %212 = vadd.xlane.f32.xlu0 %v211
    %v213 = vpop.xlane.xlu0 %212
    %v214 = vsel %vm124, %v208, 0.0
    %215 = vadd.xlane.f32.xlu0 %v214
    %v216 = vpop.xlane.xlu0 %215
    %v217 = vsel %vm124, %v209, 0.0
    %218 = vadd.xlane.f32.xlu0 %v217
    %v219 = vpop.xlane.xlu0 %218
    %v220 = vsel %vm124, %v210, 0.0
    %221 = vadd.xlane.f32.xlu0 %v220
    %v222 = vpop.xlane.xlu0 %221
    %v223 = vmul.f32 %v213, 0.17677669
    %v224 = vmul.f32 %v216, 0.17677669
    %v225 = vmul.f32 %v219, 0.17677669
    %v226 = vmul.f32 %v222, 0.17677669
    %v231 = vlaneseq
    %v232 = vand.u32 %v231, 127
    %v233 = vperm.slane %v223, %v232
    %v234 = vadd.s32 %v232, 4294967288
    %v235 = vperm.slane %v224, %v234
    %vm236 = vcmask 130112
    %v237 = vsel %vm236, %v235, %v233
    %v238 = vperm.slane %v225, %v232
    %v239 = vperm.slane %v226, %v234
    %v240 = vsel %vm236, %v239, %v238
    %v241 = vsel %vm183, %v240, %v237
    %vm243 = vcmask 123904
    %v244 = vsel %vm243, %v241, -inf
    %245 = vmax.xlane.f32.xlu0 %v244
    %v246 = vpop.xlane.xlu0 %245
    %v248 = vperm.slane %v246, 0
    %v249 = vperm.slane %v246, 1
    %v252 = vsub.f32 %v223, %v248
    %v253 = vsub.f32 %v224, %v248
    %v254 = vsub.f32 %v225, %v249
    %v255 = vsub.f32 %v226, %v249
    %v256 = vmul.f32 %v252, 1.442695
    %v257 = vpow.pop %v256
    %v258 = vmul.f32 %v253, 1.442695
    %v259 = vpow.pop %v258
    %v260 = vmul.f32 %v254, 1.442695
    %v261 = vpow.pop %v260
    %v262 = vmul.f32 %v255, 1.442695
    %v263 = vpow.pop %v262
    %268 = vset.pattern.permute.xlu0 0
    %269 = vperm.xlu0 %268, %v257
    %v270 = vpop.permute.xlu0 %269
    %271 = vset.pattern.permute.xlu0 0
    %272 = vperm.xlu0 %271, %v259
    %v273 = vpop.permute.xlu0 %272
    %274 = vset.pattern.permute.xlu0 0
    %275 = vperm.xlu0 %274, %v261
    %v276 = vpop.permute.xlu0 %275
    %277 = vset.pattern.permute.xlu0 0
    %278 = vperm.xlu0 %277, %v263
    %v279 = vpop.permute.xlu0 %278
    %v280 = vperm.slane %v270, %v232
    %v281 = vperm.slane %v273, %v234
    %v282 = vsel %vm236, %v281, %v280
    %v283 = vperm.slane %v276, %v232
    %v284 = vperm.slane %v279, %v234
    %v285 = vsel %vm236, %v284, %v283
    %v286 = vsel %vm183, %v285, %v282
    %v288 = vsel %vm243, %v286, 0.0
    %289 = vadd.xlane.f32.xlu0 %v288
    %v290 = vpop.xlane.xlu0 %289
    %v291 = vrcp.pop %v290
    %v293 = vperm.slane %v291, 0
    %v294 = vperm.slane %v291, 1
    %v297 = vmul.f32 %v257, %v293
    %v298 = vmul.f32 %v259, %v293
    %v299 = vmul.f32 %v261, %v294
    %v300 = vmul.f32 %v263, %v294
    %302 = vset.pattern.permute.xlu0 0
    %303 = vperm.xlu0 %302, %v297
    %v304 = vpop.permute.xlu0 %303
    %307 = vset.pattern.permute.xlu0 0
    %308 = vperm.xlu0 %307, %v298
    %v309 = vpop.permute.xlu0 %308
    %312 = vset.pattern.permute.xlu0 0
    %313 = vperm.xlu0 %312, %v299
    %v314 = vpop.permute.xlu0 %313
    %317 = vset.pattern.permute.xlu0 0
    %318 = vperm.xlu0 %317, %v300
    %v319 = vpop.permute.xlu0 %318
    %v321 = vmul.f32 %v304, %v104
    %v322 = vmul.f32 %v309, %v105
    %v323 = vmul.f32 %v314, %v106
    %v324 = vmul.f32 %v319, %v107
    %v325 = vsel %vm124, %v321, 0.0
    %v326 = vsel %vm124, %v322, 0.0
    %v327 = vadd.f32 %v325, %v326
    %v328 = vrot.slane %v327, 4
    %v329 = vadd.f32 %v327, %v328
    %v330 = vrot.slane %v329, 2
    %v331 = vadd.f32 %v329, %v330
    %v332 = vrot.slane %v331, 1
    %v333 = vadd.f32 %v331, %v332
    %v334 = vsel %vm124, %v323, 0.0
    %v335 = vsel %vm124, %v324, 0.0
    %v336 = vadd.f32 %v334, %v335
    %v337 = vrot.slane %v336, 4
    %v338 = vadd.f32 %v336, %v337
    %v339 = vrot.slane %v338, 2
    %v340 = vadd.f32 %v338, %v339
    %v341 = vrot.slane %v340, 1
    %v342 = vadd.f32 %v340, %v341
    %v345 = vsel %vm183, %v342, %v333
    %v346 = vsel %vm124, %v345, 0
    %348 = vmatpush.msra.mxu0 0.0
    %349 = vmatpush.msra.mxu0 0.0
    %350 = vmatpush.msra.mxu0 0.0
    %351 = vmatpush.msra.mxu0 0.0
    %352 = vmatpush.msra.mxu0 0.0
    %353 = vmatpush.msra.mxu0 0.0
    %354 = vmatpush.msra.mxu0 0.0
    %355 = vmatpush.msra.mxu0 0.0
    %356 = vmatpush.msra.mxu0 0.0
    %357 = vmatpush.msra.mxu0 0.0
    %358 = vmatpush.msra.mxu0 0.0
    %359 = vmatpush.msra.mxu0 0.0
    %360 = vmatpush.msra.mxu0 %v119
    %361 = vmatpush.msra.mxu0 %v118
    %362 = vmatpush.msra.mxu0 %v117
    %363 = vmatpush.msra.mxu0 %v116
    %364 = vmatmul.f32.gmra.mxu0 %v346
    %v365 = vpop.f32.mrf.mxu0
    %v366 = vadd.f32 0.0, %v365
    %367 = vdwg.mxu0
    %v368 = vadd.f32 %v205, %v366
    %v369 = vxor.u32 %v368, 2147483648
    %v370 = vmul.f32 %v369, 1.442695
    %v371 = vpow.pop %v370
    %v372 = vadd.f32 %v371, 1.0
    %v373 = vrcp.pop %v372
    %v374 = vmul.f32 %v372, %v373
    %v375 = vsub.f32 1.0, %v374
    %v376 = vmul.f32 %v373, %v375
    %v377 = vadd.f32 %v373, %v376
    %vm378 = vweird.f32 %v372
    %vm379 = vweird.f32 %v373
    %vm380 = vmor %vm378, %vm379
    %v381 = vsel %vm380, %v373, %v377
    %v382 = vand.u32 2147483647, %v372
    %vm383 = vcmp.eq.f32.partialorder %v382, 8.507059e+37
    %v384 = vand.u32 %v372, 2147483648
    %v385 = vor.u32 1.1754944e-38, %v384
    %v386 = vsel %vm383, %v385, %v381
    %v387 = vmul.f32 1.0, %v386
    %v388 = vtanh.pop %v368
    %389 = vrot.lane.b32.xlu0 %v184, 32
    %v390 = vpop.permute.xlu0 %389
    %v392 = vmul.f32 %v387, %v390
    %394 = vrot.lane.b32.xlu0 %v388, 32
    %v395 = vpop.permute.xlu0 %394
    %v397 = vmul.f32 %v387, %v395
    %399 = vrot.lane.b32.xlu0 %v397, 32
    %v400 = vpop.permute.xlu0 %399
    %v402 = vadd.f32 %v392, %v400
    %v403 = vtanh.pop %v402
    %405 = vrot.lane.b32.xlu0 %v403, 32
    %v406 = vpop.permute.xlu0 %405
    %v408 = vmul.f32 %v387, %v406
    %410 = vrot.lane.b32.xlu0 %v408, 64
    %v411 = vpop.permute.xlu0 %410
    %vm413 = vcmask 254976
    %414 = vst.msk [vmem:[#allocation11] sm:$0x3] %vm413, %v411
    %v416 = vrot.slane %v149, 2
    %v418 = vsel %vm124, %v411, 0
    %420 = vmatpush.msra.mxu0 0.0
    %421 = vmatpush.msra.mxu0 0.0
    %422 = vmatpush.msra.mxu0 0.0
    %423 = vmatpush.msra.mxu0 0.0
    %424 = vmatpush.msra.mxu0 0.0
    %425 = vmatpush.msra.mxu0 0.0
    %426 = vmatpush.msra.mxu0 0.0
    %427 = vmatpush.msra.mxu0 0.0
    %428 = vmatpush.msra.mxu0 0.0
    %429 = vmatpush.msra.mxu0 0.0
    %430 = vmatpush.msra.mxu0 0.0
    %431 = vmatpush.msra.mxu0 0.0
    %432 = vmatpush.msra.mxu0 %v115
    %433 = vmatpush.msra.mxu0 %v114
    %434 = vmatpush.msra.mxu0 %v113
    %435 = vmatpush.msra.mxu0 %v112
    %436 = vmatmul.f32.gmra.mxu0 %v418
    %v437 = vpop.f32.mrf.mxu0
    %v438 = vadd.f32 %v416, %v437
    %439 = vdwg.mxu0
    %v440 = vrot.slane %v408, 1
    %v441 = vperm.slane %v408, 0
    %v442 = vperm.slane %v440, 0
    %449 = vrot.lane.b32.xlu0 %v104, 64
    %v450 = vpop.permute.xlu0 %449
    %451 = vrot.lane.b32.xlu0 %v105, 64
    %v452 = vpop.permute.xlu0 %451
    %453 = vrot.lane.b32.xlu0 %v106, 64
    %v454 = vpop.permute.xlu0 %453
    %455 = vrot.lane.b32.xlu0 %v107, 64
    %v456 = vpop.permute.xlu0 %455
    %v461 = vmul.f32 %v441, %v450
    %v462 = vmul.f32 %v441, %v452
    %v463 = vmul.f32 %v442, %v454
    %v464 = vmul.f32 %v442, %v456
    %469 = vrot.lane.b32.xlu0 %v461, 64
    %v470 = vpop.permute.xlu0 %469
    %471 = vrot.lane.b32.xlu0 %v462, 64
    %v472 = vpop.permute.xlu0 %471
    %473 = vrot.lane.b32.xlu0 %v463, 64
    %v474 = vpop.permute.xlu0 %473
    %475 = vrot.lane.b32.xlu0 %v464, 64
    %v476 = vpop.permute.xlu0 %475
    %v481 = vsel %vm124, %v470, 0.0
    %482 = vadd.xlane.f32.xlu0 %v481
    %v483 = vpop.xlane.xlu0 %482
    %v484 = vsel %vm124, %v472, 0.0
    %485 = vadd.xlane.f32.xlu0 %v484
    %v486 = vpop.xlane.xlu0 %485
    %v487 = vsel %vm124, %v474, 0.0
    %488 = vadd.xlane.f32.xlu0 %v487
    %v489 = vpop.xlane.xlu0 %488
    %v490 = vsel %vm124, %v476, 0.0
    %491 = vadd.xlane.f32.xlu0 %v490
    %v492 = vpop.xlane.xlu0 %491
    %v493 = vmul.f32 %v483, 0.17677669
    %v494 = vmul.f32 %v486, 0.17677669
    %v495 = vmul.f32 %v489, 0.17677669
    %v496 = vmul.f32 %v492, 0.17677669
    %v501 = vperm.slane %v493, %v232
    %v502 = vperm.slane %v494, %v234
    %v503 = vsel %vm236, %v502, %v501
    %v504 = vperm.slane %v495, %v232
    %v505 = vperm.slane %v496, %v234
    %v506 = vsel %vm236, %v505, %v504
    %v507 = vsel %vm183, %v506, %v503
    %v509 = vsel %vm243, %v507, -inf
    %510 = vmax.xlane.f32.xlu0 %v509
    %v511 = vpop.xlane.xlu0 %510
    %v513 = vperm.slane %v511, 0
    %v514 = vperm.slane %v511, 1
    %v517 = vsub.f32 %v493, %v513
    %v518 = vsub.f32 %v494, %v513
    %v519 = vsub.f32 %v495, %v514
    %v520 = vsub.f32 %v496, %v514
    %v521 = vmul.f32 %v517, 1.442695
    %v522 = vpow.pop %v521
    %v523 = vmul.f32 %v518, 1.442695
    %v524 = vpow.pop %v523
    %v525 = vmul.f32 %v519, 1.442695
    %v526 = vpow.pop %v525
    %v527 = vmul.f32 %v520, 1.442695
    %v528 = vpow.pop %v527
    %533 = vset.pattern.permute.xlu0 0
    %534 = vperm.xlu0 %533, %v522
    %v535 = vpop.permute.xlu0 %534
    %536 = vset.pattern.permute.xlu0 0
    %537 = vperm.xlu0 %536, %v524
    %v538 = vpop.permute.xlu0 %537
    %539 = vset.pattern.permute.xlu0 0
    %540 = vperm.xlu0 %539, %v526
    %v541 = vpop.permute.xlu0 %540
    %542 = vset.pattern.permute.xlu0 0
    %543 = vperm.xlu0 %542, %v528
    %v544 = vpop.permute.xlu0 %543
    %v545 = vperm.slane %v535, %v232
    %v546 = vperm.slane %v538, %v234
    %v547 = vsel %vm236, %v546, %v545
    %v548 = vperm.slane %v541, %v232
    %v549 = vperm.slane %v544, %v234
    %v550 = vsel %vm236, %v549, %v548
    %v551 = vsel %vm183, %v550, %v547
    %v553 = vsel %vm243, %v551, 0.0
    %554 = vadd.xlane.f32.xlu0 %v553
    %v555 = vpop.xlane.xlu0 %554
    %v556 = vrcp.pop %v555
    %v558 = vperm.slane %v556, 0
    %v559 = vperm.slane %v556, 1
    %v562 = vmul.f32 %v522, %v558
    %v563 = vmul.f32 %v524, %v558
    %v564 = vmul.f32 %v526, %v559
    %v565 = vmul.f32 %v528, %v559
    %567 = vset.pattern.permute.xlu0 0
    %568 = vperm.xlu0 %567, %v562
    %v569 = vpop.permute.xlu0 %568
    %572 = vset.pattern.permute.xlu0 0
    %573 = vperm.xlu0 %572, %v563
    %v574 = vpop.permute.xlu0 %573
    %577 = vset.pattern.permute.xlu0 0
    %578 = vperm.xlu0 %577, %v564
    %v579 = vpop.permute.xlu0 %578
    %582 = vset.pattern.permute.xlu0 0
    %583 = vperm.xlu0 %582, %v565
    %v584 = vpop.permute.xlu0 %583
    %v586 = vmul.f32 %v569, %v104
    %v587 = vmul.f32 %v574, %v105
    %v588 = vmul.f32 %v579, %v106
    %v589 = vmul.f32 %v584, %v107
    %v590 = vsel %vm124, %v586, 0.0
    %v591 = vsel %vm124, %v587, 0.0
    %v592 = vadd.f32 %v590, %v591
    %v593 = vrot.slane %v592, 4
    %v594 = vadd.f32 %v592, %v593
    %v595 = vrot.slane %v594, 2
    %v596 = vadd.f32 %v594, %v595
    %v597 = vrot.slane %v596, 1
    %v598 = vadd.f32 %v596, %v597
    %v599 = vsel %vm124, %v588, 0.0
    %v600 = vsel %vm124, %v589, 0.0
    %v601 = vadd.f32 %v599, %v600
    %v602 = vrot.slane %v601, 4
    %v603 = vadd.f32 %v601, %v602
    %v604 = vrot.slane %v603, 2
    %v605 = vadd.f32 %v603, %v604
    %v606 = vrot.slane %v605, 1
    %v607 = vadd.f32 %v605, %v606
    %v610 = vsel %vm183, %v607, %v598
    %v611 = vsel %vm124, %v610, 0
    %613 = vmatpush.msra.mxu0 0.0
    %614 = vmatpush.msra.mxu0 0.0
    %615 = vmatpush.msra.mxu0 0.0
    %616 = vmatpush.msra.mxu0 0.0
    %617 = vmatpush.msra.mxu0 0.0
    %618 = vmatpush.msra.mxu0 0.0
    %619 = vmatpush.msra.mxu0 0.0
    %620 = vmatpush.msra.mxu0 0.0
    %621 = vmatpush.msra.mxu0 0.0
    %622 = vmatpush.msra.mxu0 0.0
    %623 = vmatpush.msra.mxu0 0.0
    %624 = vmatpush.msra.mxu0 0.0
    %625 = vmatpush.msra.mxu0 %v119
    %626 = vmatpush.msra.mxu0 %v118
    %627 = vmatpush.msra.mxu0 %v117
    %628 = vmatpush.msra.mxu0 %v116
    %629 = vmatmul.f32.gmra.mxu0 %v611
    %v630 = vpop.f32.mrf.mxu0
    %v631 = vadd.f32 0.0, %v630
    %632 = vdwg.mxu0
    %v633 = vadd.f32 %v438, %v631
    %v634 = vxor.u32 %v633, 2147483648
    %v635 = vmul.f32 %v634, 1.442695
    %v636 = vpow.pop %v635
    %v637 = vadd.f32 %v636, 1.0
    %v638 = vrcp.pop %v637
    %v639 = vmul.f32 %v637, %v638
    %v640 = vsub.f32 1.0, %v639
    %v641 = vmul.f32 %v638, %v640
    %v642 = vadd.f32 %v638, %v641
    %vm643 = vweird.f32 %v637
    %vm644 = vweird.f32 %v638
    %vm645 = vmor %vm643, %vm644
    %v646 = vsel %vm645, %v638, %v642
    %v647 = vand.u32 2147483647, %v637
    %vm648 = vcmp.eq.f32.partialorder %v647, 8.507059e+37
    %v649 = vand.u32 %v637, 2147483648
    %v650 = vor.u32 1.1754944e-38, %v649
    %v651 = vsel %vm648, %v650, %v646
    %v652 = vmul.f32 1.0, %v651
    %v653 = vtanh.pop %v633
    %v654 = vmul.f32 %v652, %v402
    %656 = vrot.lane.b32.xlu0 %v653, 32
    %v657 = vpop.permute.xlu0 %656
    %v659 = vmul.f32 %v652, %v657
    %661 = vrot.lane.b32.xlu0 %v659, 32
    %v662 = vpop.permute.xlu0 %661
    %v664 = vadd.f32 %v654, %v662
    %v665 = vtanh.pop %v664
    %667 = vrot.lane.b32.xlu0 %v665, 32
    %v668 = vpop.permute.xlu0 %667
    %v670 = vmul.f32 %v652, %v668
    %672 = vrot.lane.b32.xlu0 %v670, 96
    %v673 = vpop.permute.xlu0 %672
    %vm675 = vcmask 517376
    %676 = vst.msk [vmem:[#allocation11] sm:$0x3] %vm675, %v673
    %677 = vrot.lane.b32.xlu0 %v670, 64
    %v678 = vpop.permute.xlu0 %677
    %v679 = vrot.slane %v149, 4
    %v681 = vsel %vm124, %v678, 0
    %683 = vmatpush.msra.mxu0 0.0
    %684 = vmatpush.msra.mxu0 0.0
    %685 = vmatpush.msra.mxu0 0.0
    %686 = vmatpush.msra.mxu0 0.0
    %687 = vmatpush.msra.mxu0 0.0
    %688 = vmatpush.msra.mxu0 0.0
    %689 = vmatpush.msra.mxu0 0.0
    %690 = vmatpush.msra.mxu0 0.0
    %691 = vmatpush.msra.mxu0 0.0
    %692 = vmatpush.msra.mxu0 0.0
    %693 = vmatpush.msra.mxu0 0.0
    %694 = vmatpush.msra.mxu0 0.0
    %695 = vmatpush.msra.mxu0 %v115
    %696 = vmatpush.msra.mxu0 %v114
    %697 = vmatpush.msra.mxu0 %v113
    %698 = vmatpush.msra.mxu0 %v112
    %699 = vmatmul.f32.gmra.mxu0 %v681
    %v700 = vpop.f32.mrf.mxu0
    %v701 = vadd.f32 %v679, %v700
    %702 = vdwg.mxu0
    %v703 = vrot.slane %v670, 1
    %v704 = vperm.slane %v670, 0
    %v705 = vperm.slane %v703, 0
    %v708 = vmul.f32 %v704, %v450
    %v709 = vmul.f32 %v704, %v452
    %v710 = vmul.f32 %v705, %v454
    %v711 = vmul.f32 %v705, %v456
    %716 = vrot.lane.b32.xlu0 %v708, 64
    %v717 = vpop.permute.xlu0 %716
    %718 = vrot.lane.b32.xlu0 %v709, 64
    %v719 = vpop.permute.xlu0 %718
    %720 = vrot.lane.b32.xlu0 %v710, 64
    %v721 = vpop.permute.xlu0 %720
    %722 = vrot.lane.b32.xlu0 %v711, 64
    %v723 = vpop.permute.xlu0 %722
    %v728 = vsel %vm124, %v717, 0.0
    %729 = vadd.xlane.f32.xlu0 %v728
    %v730 = vpop.xlane.xlu0 %729
    %v731 = vsel %vm124, %v719, 0.0
    %732 = vadd.xlane.f32.xlu0 %v731
    %v733 = vpop.xlane.xlu0 %732
    %v734 = vsel %vm124, %v721, 0.0
    %735 = vadd.xlane.f32.xlu0 %v734
    %v736 = vpop.xlane.xlu0 %735
    %v737 = vsel %vm124, %v723, 0.0
    %738 = vadd.xlane.f32.xlu0 %v737
    %v739 = vpop.xlane.xlu0 %738
    %v740 = vmul.f32 %v730, 0.17677669
    %v741 = vmul.f32 %v733, 0.17677669
    %v742 = vmul.f32 %v736, 0.17677669
    %v743 = vmul.f32 %v739, 0.17677669
    %v748 = vperm.slane %v740, %v232
    %v749 = vperm.slane %v741, %v234
    %v750 = vsel %vm236, %v749, %v748
    %v751 = vperm.slane %v742, %v232
    %v752 = vperm.slane %v743, %v234
    %v753 = vsel %vm236, %v752, %v751
    %v754 = vsel %vm183, %v753, %v750
    %v756 = vsel %vm243, %v754, -inf
    %757 = vmax.xlane.f32.xlu0 %v756
    %v758 = vpop.xlane.xlu0 %757
    %v760 = vperm.slane %v758, 0
    %v761 = vperm.slane %v758, 1
    %v764 = vsub.f32 %v740, %v760
    %v765 = vsub.f32 %v741, %v760
    %v766 = vsub.f32 %v742, %v761
    %v767 = vsub.f32 %v743, %v761
    %v768 = vmul.f32 %v764, 1.442695
    %v769 = vpow.pop %v768
    %v770 = vmul.f32 %v765, 1.442695
    %v771 = vpow.pop %v770
    %v772 = vmul.f32 %v766, 1.442695
    %v773 = vpow.pop %v772
    %v774 = vmul.f32 %v767, 1.442695
    %v775 = vpow.pop %v774
    %780 = vset.pattern.permute.xlu0 0
    %781 = vperm.xlu0 %780, %v769
    %v782 = vpop.permute.xlu0 %781
    %783 = vset.pattern.permute.xlu0 0
    %784 = vperm.xlu0 %783, %v771
    %v785 = vpop.permute.xlu0 %784
    %786 = vset.pattern.permute.xlu0 0
    %787 = vperm.xlu0 %786, %v773
    %v788 = vpop.permute.xlu0 %787
    %789 = vset.pattern.permute.xlu0 0
    %790 = vperm.xlu0 %789, %v775
    %v791 = vpop.permute.xlu0 %790
    %v792 = vperm.slane %v782, %v232
    %v793 = vperm.slane %v785, %v234
    %v794 = vsel %vm236, %v793, %v792
    %v795 = vperm.slane %v788, %v232
    %v796 = vperm.slane %v791, %v234
    %v797 = vsel %vm236, %v796, %v795
    %v798 = vsel %vm183, %v797, %v794
    %v800 = vsel %vm243, %v798, 0.0
    %801 = vadd.xlane.f32.xlu0 %v800
    %v802 = vpop.xlane.xlu0 %801
    %v803 = vrcp.pop %v802
    %v805 = vperm.slane %v803, 0
    %v806 = vperm.slane %v803, 1
    %v809 = vmul.f32 %v769, %v805
    %v810 = vmul.f32 %v771, %v805
    %v811 = vmul.f32 %v773, %v806
    %v812 = vmul.f32 %v775, %v806
    %814 = vset.pattern.permute.xlu0 0
    %815 = vperm.xlu0 %814, %v809
    %v816 = vpop.permute.xlu0 %815
    %819 = vset.pattern.permute.xlu0 0
    %820 = vperm.xlu0 %819, %v810
    %v821 = vpop.permute.xlu0 %820
    %824 = vset.pattern.permute.xlu0 0
    %825 = vperm.xlu0 %824, %v811
    %v826 = vpop.permute.xlu0 %825
    %829 = vset.pattern.permute.xlu0 0
    %830 = vperm.xlu0 %829, %v812
    %v831 = vpop.permute.xlu0 %830
    %v833 = vmul.f32 %v816, %v104
    %v834 = vmul.f32 %v821, %v105
    %v835 = vmul.f32 %v826, %v106
    %v836 = vmul.f32 %v831, %v107
    %v837 = vsel %vm124, %v833, 0.0
    %v838 = vsel %vm124, %v834, 0.0
    %v839 = vadd.f32 %v837, %v838
    %v840 = vrot.slane %v839, 4
    %v841 = vadd.f32 %v839, %v840
    %v842 = vrot.slane %v841, 2
    %v843 = vadd.f32 %v841, %v842
    %v844 = vrot.slane %v843, 1
    %v845 = vadd.f32 %v843, %v844
    %v846 = vsel %vm124, %v835, 0.0
    %v847 = vsel %vm124, %v836, 0.0
    %v848 = vadd.f32 %v846, %v847
    %v849 = vrot.slane %v848, 4
    %v850 = vadd.f32 %v848, %v849
    %v851 = vrot.slane %v850, 2
    %v852 = vadd.f32 %v850, %v851
    %v853 = vrot.slane %v852, 1
    %v854 = vadd.f32 %v852, %v853
    %v857 = vsel %vm183, %v854, %v845
    %v858 = vsel %vm124, %v857, 0
    %860 = vmatpush.msra.mxu0 0.0
    %861 = vmatpush.msra.mxu0 0.0
    %862 = vmatpush.msra.mxu0 0.0
    %863 = vmatpush.msra.mxu0 0.0
    %864 = vmatpush.msra.mxu0 0.0
    %865 = vmatpush.msra.mxu0 0.0
    %866 = vmatpush.msra.mxu0 0.0
    %867 = vmatpush.msra.mxu0 0.0
    %868 = vmatpush.msra.mxu0 0.0
    %869 = vmatpush.msra.mxu0 0.0
    %870 = vmatpush.msra.mxu0 0.0
    %871 = vmatpush.msra.mxu0 0.0
    %872 = vmatpush.msra.mxu0 %v119
    %873 = vmatpush.msra.mxu0 %v118
    %874 = vmatpush.msra.mxu0 %v117
    %875 = vmatpush.msra.mxu0 %v116
    %876 = vmatmul.f32.gmra.mxu0 %v858
    %v877 = vpop.f32.mrf.mxu0
    %v878 = vadd.f32 0.0, %v877
    %879 = vdwg.mxu0
    %v880 = vadd.f32 %v701, %v878
    %v881 = vxor.u32 %v880, 2147483648
    %v882 = vmul.f32 %v881, 1.442695
    %v883 = vpow.pop %v882
    %v884 = vadd.f32 %v883, 1.0
    %v885 = vrcp.pop %v884
    %v886 = vmul.f32 %v884, %v885
    %v887 = vsub.f32 1.0, %v886
    %v888 = vmul.f32 %v885, %v887
    %v889 = vadd.f32 %v885, %v888
    %vm890 = vweird.f32 %v884
    %vm891 = vweird.f32 %v885
    %vm892 = vmor %vm890, %vm891
    %v893 = vsel %vm892, %v885, %v889
    %v894 = vand.u32 2147483647, %v884
    %vm895 = vcmp.eq.f32.partialorder %v894, 8.507059e+37
    %v896 = vand.u32 %v884, 2147483648
    %v897 = vor.u32 1.1754944e-38, %v896
    %v898 = vsel %vm895, %v897, %v893
    %v899 = vmul.f32 1.0, %v898
    %v900 = vtanh.pop %v880
    %v901 = vmul.f32 %v899, %v664
    %903 = vrot.lane.b32.xlu0 %v900, 32
    %v904 = vpop.permute.xlu0 %903
    %v906 = vmul.f32 %v899, %v904
    %908 = vrot.lane.b32.xlu0 %v906, 32
    %v909 = vpop.permute.xlu0 %908
    %v911 = vadd.f32 %v901, %v909
    %v912 = vtanh.pop %v911
    %914 = vrot.lane.b32.xlu0 %v912, 32
    %v915 = vpop.permute.xlu0 %914
    %v917 = vmul.f32 %v899, %v915
    %vm918 = vcmask 779776
    %919 = vst.msk [vmem:[#allocation11] sm:$0x3] %vm918, %v917
    %921 = vrot.lane.b32.xlu0 %v917, 64
    %v922 = vpop.permute.xlu0 %921
    %v923 = vrot.slane %v149, 6
    %v925 = vsel %vm124, %v922, 0
    %927 = vmatpush.msra.mxu0 0.0
    %928 = vmatpush.msra.mxu0 0.0
    %929 = vmatpush.msra.mxu0 0.0
    %930 = vmatpush.msra.mxu0 0.0
    %931 = vmatpush.msra.mxu0 0.0
    %932 = vmatpush.msra.mxu0 0.0
    %933 = vmatpush.msra.mxu0 0.0
    %934 = vmatpush.msra.mxu0 0.0
    %935 = vmatpush.msra.mxu0 0.0
    %936 = vmatpush.msra.mxu0 0.0
    %937 = vmatpush.msra.mxu0 0.0
    %938 = vmatpush.msra.mxu0 0.0
    %939 = vmatpush.msra.mxu0 %v115
    %940 = vmatpush.msra.mxu0 %v114
    %941 = vmatpush.msra.mxu0 %v113
    %942 = vmatpush.msra.mxu0 %v112
    %943 = vmatmul.f32.gmra.mxu0 %v925
    %v944 = vpop.f32.mrf.mxu0
    %v945 = vadd.f32 %v923, %v944
    %946 = vdwg.mxu0
    %v947 = vrot.slane %v917, 1
    %v948 = vperm.slane %v917, 0
    %v949 = vperm.slane %v947, 0
    %v952 = vmul.f32 %v948, %v450
    %v953 = vmul.f32 %v948, %v452
    %v954 = vmul.f32 %v949, %v454
    %v955 = vmul.f32 %v949, %v456
    %960 = vrot.lane.b32.xlu0 %v952, 64
    %v961 = vpop.permute.xlu0 %960
    %962 = vrot.lane.b32.xlu0 %v953, 64
    %v963 = vpop.permute.xlu0 %962
    %964 = vrot.lane.b32.xlu0 %v954, 64
    %v965 = vpop.permute.xlu0 %964
    %966 = vrot.lane.b32.xlu0 %v955, 64
    %v967 = vpop.permute.xlu0 %966
    %v972 = vsel %vm124, %v961, 0.0
    %973 = vadd.xlane.f32.xlu0 %v972
    %v974 = vpop.xlane.xlu0 %973
    %v975 = vsel %vm124, %v963, 0.0
    %976 = vadd.xlane.f32.xlu0 %v975
    %v977 = vpop.xlane.xlu0 %976
    %v978 = vsel %vm124, %v965, 0.0
    %979 = vadd.xlane.f32.xlu0 %v978
    %v980 = vpop.xlane.xlu0 %979
    %v981 = vsel %vm124, %v967, 0.0
    %982 = vadd.xlane.f32.xlu0 %v981
    %v983 = vpop.xlane.xlu0 %982
    %v984 = vmul.f32 %v974, 0.17677669
    %v985 = vmul.f32 %v977, 0.17677669
    %v986 = vmul.f32 %v980, 0.17677669
    %v987 = vmul.f32 %v983, 0.17677669
    %v992 = vperm.slane %v984, %v232
    %v993 = vperm.slane %v985, %v234
    %v994 = vsel %vm236, %v993, %v992
    %v995 = vperm.slane %v986, %v232
    %v996 = vperm.slane %v987, %v234
    %v997 = vsel %vm236, %v996, %v995
    %v998 = vsel %vm183, %v997, %v994
    %v1000 = vsel %vm243, %v998, -inf
    %1001 = vmax.xlane.f32.xlu0 %v1000
    %v1002 = vpop.xlane.xlu0 %1001
    %v1004 = vperm.slane %v1002, 0
    %v1005 = vperm.slane %v1002, 1
    %v1008 = vsub.f32 %v984, %v1004
    %v1009 = vsub.f32 %v985, %v1004
    %v1010 = vsub.f32 %v986, %v1005
    %v1011 = vsub.f32 %v987, %v1005
    %v1012 = vmul.f32 %v1008, 1.442695
    %v1013 = vpow.pop %v1012
    %v1014 = vmul.f32 %v1009, 1.442695
    %v1015 = vpow.pop %v1014
    %v1016 = vmul.f32 %v1010, 1.442695
    %v1017 = vpow.pop %v1016
    %v1018 = vmul.f32 %v1011, 1.442695
    %v1019 = vpow.pop %v1018
    %1024 = vset.pattern.permute.xlu0 0
    %1025 = vperm.xlu0 %1024, %v1013
    %v1026 = vpop.permute.xlu0 %1025
    %1027 = vset.pattern.permute.xlu0 0
    %1028 = vperm.xlu0 %1027, %v1015
    %v1029 = vpop.permute.xlu0 %1028
    %1030 = vset.pattern.permute.xlu0 0
    %1031 = vperm.xlu0 %1030, %v1017
    %v1032 = vpop.permute.xlu0 %1031
    %1033 = vset.pattern.permute.xlu0 0
    %1034 = vperm.xlu0 %1033, %v1019
    %v1035 = vpop.permute.xlu0 %1034
    %v1036 = vperm.slane %v1026, %v232
    %v1037 = vperm.slane %v1029, %v234
    %v1038 = vsel %vm236, %v1037, %v1036
    %v1039 = vperm.slane %v1032, %v232
    %v1040 = vperm.slane %v1035, %v234
    %v1041 = vsel %vm236, %v1040, %v1039
    %v1042 = vsel %vm183, %v1041, %v1038
    %v1044 = vsel %vm243, %v1042, 0.0
    %1045 = vadd.xlane.f32.xlu0 %v1044
    %v1046 = vpop.xlane.xlu0 %1045
    %v1047 = vrcp.pop %v1046
    %v1049 = vperm.slane %v1047, 0
    %v1050 = vperm.slane %v1047, 1
    %v1053 = vmul.f32 %v1013, %v1049
    %v1054 = vmul.f32 %v1015, %v1049
    %v1055 = vmul.f32 %v1017, %v1050
    %v1056 = vmul.f32 %v1019, %v1050
    %1058 = vset.pattern.permute.xlu0 0
    %1059 = vperm.xlu0 %1058, %v1053
    %v1060 = vpop.permute.xlu0 %1059
    %1063 = vset.pattern.permute.xlu0 0
    %1064 = vperm.xlu0 %1063, %v1054
    %v1065 = vpop.permute.xlu0 %1064
    %1068 = vset.pattern.permute.xlu0 0
    %1069 = vperm.xlu0 %1068, %v1055
    %v1070 = vpop.permute.xlu0 %1069
    %1073 = vset.pattern.permute.xlu0 0
    %1074 = vperm.xlu0 %1073, %v1056
    %v1075 = vpop.permute.xlu0 %1074
    %v1077 = vmul.f32 %v1060, %v104
    %v1078 = vmul.f32 %v1065, %v105
    %v1079 = vmul.f32 %v1070, %v106
    %v1080 = vmul.f32 %v1075, %v107
    %v1081 = vsel %vm124, %v1077, 0.0
    %v1082 = vsel %vm124, %v1078, 0.0
    %v1083 = vadd.f32 %v1081, %v1082
    %v1084 = vrot.slane %v1083, 4
    %v1085 = vadd.f32 %v1083, %v1084
    %v1086 = vrot.slane %v1085, 2
    %v1087 = vadd.f32 %v1085, %v1086
    %v1088 = vrot.slane %v1087, 1
    %v1089 = vadd.f32 %v1087, %v1088
    %v1090 = vsel %vm124, %v1079, 0.0
    %v1091 = vsel %vm124, %v1080, 0.0
    %v1092 = vadd.f32 %v1090, %v1091
    %v1093 = vrot.slane %v1092, 4
    %v1094 = vadd.f32 %v1092, %v1093
    %v1095 = vrot.slane %v1094, 2
    %v1096 = vadd.f32 %v1094, %v1095
    %v1097 = vrot.slane %v1096, 1
    %v1098 = vadd.f32 %v1096, %v1097
    %v1101 = vsel %vm183, %v1098, %v1089
    %v1102 = vsel %vm124, %v1101, 0
    %1104 = vmatpush.msra.mxu0 0.0
    %1105 = vmatpush.msra.mxu0 0.0
    %1106 = vmatpush.msra.mxu0 0.0
    %1107 = vmatpush.msra.mxu0 0.0
    %1108 = vmatpush.msra.mxu0 0.0
    %1109 = vmatpush.msra.mxu0 0.0
    %1110 = vmatpush.msra.mxu0 0.0
    %1111 = vmatpush.msra.mxu0 0.0
    %1112 = vmatpush.msra.mxu0 0.0
    %1113 = vmatpush.msra.mxu0 0.0
    %1114 = vmatpush.msra.mxu0 0.0
    %1115 = vmatpush.msra.mxu0 0.0
    %1116 = vmatpush.msra.mxu0 %v119
    %1117 = vmatpush.msra.mxu0 %v118
    %1118 = vmatpush.msra.mxu0 %v117
    %1119 = vmatpush.msra.mxu0 %v116
    %1120 = vmatmul.f32.gmra.mxu0 %v1102
    %v1121 = vpop.f32.mrf.mxu0
    %v1122 = vadd.f32 0.0, %v1121
    %1123 = vdwg.mxu0
    %v1124 = vadd.f32 %v945, %v1122
    %v1125 = vxor.u32 %v1124, 2147483648
    %v1126 = vmul.f32 %v1125, 1.442695
    %v1127 = vpow.pop %v1126
    %v1128 = vadd.f32 %v1127, 1.0
    %v1129 = vrcp.pop %v1128
    %v1130 = vmul.f32 %v1128, %v1129
    %v1131 = vsub.f32 1.0, %v1130
    %v1132 = vmul.f32 %v1129, %v1131
    %v1133 = vadd.f32 %v1129, %v1132
    %vm1134 = vweird.f32 %v1128
    %vm1135 = vweird.f32 %v1129
    %vm1136 = vmor %vm1134, %vm1135
    %v1137 = vsel %vm1136, %v1129, %v1133
    %v1138 = vand.u32 2147483647, %v1128
    %vm1139 = vcmp.eq.f32.partialorder %v1138, 8.507059e+37
    %v1140 = vand.u32 %v1128, 2147483648
    %v1141 = vor.u32 1.1754944e-38, %v1140
    %v1142 = vsel %vm1139, %v1141, %v1137
    %v1143 = vmul.f32 1.0, %v1142
    %v1144 = vtanh.pop %v1124
    %v1145 = vmul.f32 %v1143, %v911
    %1147 = vrot.lane.b32.xlu0 %v1144, 32
    %v1148 = vpop.permute.xlu0 %1147
    %v1150 = vmul.f32 %v1143, %v1148
    %1152 = vrot.lane.b32.xlu0 %v1150, 32
    %v1153 = vpop.permute.xlu0 %1152
    %v1155 = vadd.f32 %v1145, %v1153
    %v1156 = vtanh.pop %v1155
    %1158 = vrot.lane.b32.xlu0 %v1156, 32
    %v1159 = vpop.permute.xlu0 %1158
    %v1161 = vmul.f32 %v1143, %v1159
    %1163 = vrot.lane.b32.xlu0 %v1161, 32
    %v1164 = vpop.permute.xlu0 %1163
    %vm1166 = vcmask 1042176
    %1167 = vst.msk [vmem:[#allocation11] sm:$0x3] %vm1166, %v1164
    %1168 = vrot.lane.b32.xlu0 %v1161, 64
    %v1169 = vpop.permute.xlu0 %1168
    %v1170 = vsel %vm124, %v1169, 0
    %1172 = vmatpush.msra.mxu0 0.0
    %1173 = vmatpush.msra.mxu0 0.0
    %1174 = vmatpush.msra.mxu0 0.0
    %1175 = vmatpush.msra.mxu0 0.0
    %1176 = vmatpush.msra.mxu0 0.0
    %1177 = vmatpush.msra.mxu0 0.0
    %1178 = vmatpush.msra.mxu0 0.0
    %1179 = vmatpush.msra.mxu0 0.0
    %1180 = vmatpush.msra.mxu0 0.0
    %1181 = vmatpush.msra.mxu0 0.0
    %1182 = vmatpush.msra.mxu0 0.0
    %1183 = vmatpush.msra.mxu0 0.0
    %1184 = vmatpush.msra.mxu0 %v115
    %1185 = vmatpush.msra.mxu0 %v114
    %1186 = vmatpush.msra.mxu0 %v113
    %1187 = vmatpush.msra.mxu0 %v112
    %1188 = vmatmul.f32.gmra.mxu0 %v1170
    %v1189 = vpop.f32.mrf.mxu0
    %v1190 = vadd.f32 %v152, %v1189
    %1191 = vdwg.mxu0
    %v1192 = vrot.slane %v1161, 1
    %v1193 = vperm.slane %v1161, 0
    %v1194 = vperm.slane %v1192, 0
    %v1197 = vmul.f32 %v1193, %v450
    %v1198 = vmul.f32 %v1193, %v452
    %v1199 = vmul.f32 %v1194, %v454
    %v1200 = vmul.f32 %v1194, %v456
    %1205 = vrot.lane.b32.xlu0 %v1197, 64
    %v1206 = vpop.permute.xlu0 %1205
    %1207 = vrot.lane.b32.xlu0 %v1198, 64
    %v1208 = vpop.permute.xlu0 %1207
    %1209 = vrot.lane.b32.xlu0 %v1199, 64
    %v1210 = vpop.permute.xlu0 %1209
    %1211 = vrot.lane.b32.xlu0 %v1200, 64
    %v1212 = vpop.permute.xlu0 %1211
    %v1217 = vsel %vm124, %v1206, 0.0
    %1218 = vadd.xlane.f32.xlu0 %v1217
    %v1219 = vpop.xlane.xlu0 %1218
    %v1220 = vsel %vm124, %v1208, 0.0
    %1221 = vadd.xlane.f32.xlu0 %v1220
    %v1222 = vpop.xlane.xlu0 %1221
    %v1223 = vsel %vm124, %v1210, 0.0
    %1224 = vadd.xlane.f32.xlu0 %v1223
    %v1225 = vpop.xlane.xlu0 %1224
    %v1226 = vsel %vm124, %v1212, 0.0
    %1227 = vadd.xlane.f32.xlu0 %v1226
    %v1228 = vpop.xlane.xlu0 %1227
    %v1229 = vmul.f32 %v1219, 0.17677669
    %v1230 = vmul.f32 %v1222, 0.17677669
    %v1231 = vmul.f32 %v1225, 0.17677669
    %v1232 = vmul.f32 %v1228, 0.17677669
    %v1237 = vperm.slane %v1229, %v232
    %v1238 = vperm.slane %v1230, %v234
    %v1239 = vsel %vm236, %v1238, %v1237
    %v1240 = vperm.slane %v1231, %v232
    %v1241 = vperm.slane %v1232, %v234
    %v1242 = vsel %vm236, %v1241, %v1240
    %v1243 = vsel %vm183, %v1242, %v1239
    %v1245 = vsel %vm243, %v1243, -inf
    %1246 = vmax.xlane.f32.xlu0 %v1245
    %v1247 = vpop.xlane.xlu0 %1246
    %v1249 = vperm.slane %v1247, 0
    %v1250 = vperm.slane %v1247, 1
    %v1253 = vsub.f32 %v1229, %v1249
    %v1254 = vsub.f32 %v1230, %v1249
    %v1255 = vsub.f32 %v1231, %v1250
    %v1256 = vsub.f32 %v1232, %v1250
    %v1257 = vmul.f32 %v1253, 1.442695
    %v1258 = vpow.pop %v1257
    %v1259 = vmul.f32 %v1254, 1.442695
    %v1260 = vpow.pop %v1259
    %v1261 = vmul.f32 %v1255, 1.442695
    %v1262 = vpow.pop %v1261
    %v1263 = vmul.f32 %v1256, 1.442695
    %v1264 = vpow.pop %v1263
    %1269 = vset.pattern.permute.xlu0 0
    %1270 = vperm.xlu0 %1269, %v1258
    %v1271 = vpop.permute.xlu0 %1270
    %1272 = vset.pattern.permute.xlu0 0
    %1273 = vperm.xlu0 %1272, %v1260
    %v1274 = vpop.permute.xlu0 %1273
    %1275 = vset.pattern.permute.xlu0 0
    %1276 = vperm.xlu0 %1275, %v1262
    %v1277 = vpop.permute.xlu0 %1276
    %1278 = vset.pattern.permute.xlu0 0
    %1279 = vperm.xlu0 %1278, %v1264
    %v1280 = vpop.permute.xlu0 %1279
    %v1281 = vperm.slane %v1271, %v232
    %v1282 = vperm.slane %v1274, %v234
    %v1283 = vsel %vm236, %v1282, %v1281
    %v1284 = vperm.slane %v1277, %v232
    %v1285 = vperm.slane %v1280, %v234
    %v1286 = vsel %vm236, %v1285, %v1284
    %v1287 = vsel %vm183, %v1286, %v1283
    %v1289 = vsel %vm243, %v1287, 0.0
    %1290 = vadd.xlane.f32.xlu0 %v1289
    %v1291 = vpop.xlane.xlu0 %1290
    %v1292 = vrcp.pop %v1291
    %v1294 = vperm.slane %v1292, 0
    %v1295 = vperm.slane %v1292, 1
    %v1298 = vmul.f32 %v1258, %v1294
    %v1299 = vmul.f32 %v1260, %v1294
    %v1300 = vmul.f32 %v1262, %v1295
    %v1301 = vmul.f32 %v1264, %v1295
    %1303 = vset.pattern.permute.xlu0 0
    %1304 = vperm.xlu0 %1303, %v1298
    %v1305 = vpop.permute.xlu0 %1304
    %1308 = vset.pattern.permute.xlu0 0
    %1309 = vperm.xlu0 %1308, %v1299
    %v1310 = vpop.permute.xlu0 %1309
    %1313 = vset.pattern.permute.xlu0 0
    %1314 = vperm.xlu0 %1313, %v1300
    %v1315 = vpop.permute.xlu0 %1314
    %1318 = vset.pattern.permute.xlu0 0
    %1319 = vperm.xlu0 %1318, %v1301
    %v1320 = vpop.permute.xlu0 %1319
    %v1322 = vmul.f32 %v1305, %v104
    %v1323 = vmul.f32 %v1310, %v105
    %v1324 = vmul.f32 %v1315, %v106
    %v1325 = vmul.f32 %v1320, %v107
    %v1326 = vsel %vm124, %v1322, 0.0
    %v1327 = vsel %vm124, %v1323, 0.0
    %v1328 = vadd.f32 %v1326, %v1327
    %v1329 = vrot.slane %v1328, 4
    %v1330 = vadd.f32 %v1328, %v1329
    %v1331 = vrot.slane %v1330, 2
    %v1332 = vadd.f32 %v1330, %v1331
    %v1333 = vrot.slane %v1332, 1
    %v1334 = vadd.f32 %v1332, %v1333
    %v1335 = vsel %vm124, %v1324, 0.0
    %v1336 = vsel %vm124, %v1325, 0.0
    %v1337 = vadd.f32 %v1335, %v1336
    %v1338 = vrot.slane %v1337, 4
    %v1339 = vadd.f32 %v1337, %v1338
    %v1340 = vrot.slane %v1339, 2
    %v1341 = vadd.f32 %v1339, %v1340
    %v1342 = vrot.slane %v1341, 1
    %v1343 = vadd.f32 %v1341, %v1342
    %v1346 = vsel %vm183, %v1343, %v1334
    %v1347 = vsel %vm124, %v1346, 0
    %1349 = vmatpush.msra.mxu0 0.0
    %1350 = vmatpush.msra.mxu0 0.0
    %1351 = vmatpush.msra.mxu0 0.0
    %1352 = vmatpush.msra.mxu0 0.0
    %1353 = vmatpush.msra.mxu0 0.0
    %1354 = vmatpush.msra.mxu0 0.0
    %1355 = vmatpush.msra.mxu0 0.0
    %1356 = vmatpush.msra.mxu0 0.0
    %1357 = vmatpush.msra.mxu0 0.0
    %1358 = vmatpush.msra.mxu0 0.0
    %1359 = vmatpush.msra.mxu0 0.0
    %1360 = vmatpush.msra.mxu0 0.0
    %1361 = vmatpush.msra.mxu0 %v119
    %1362 = vmatpush.msra.mxu0 %v118
    %1363 = vmatpush.msra.mxu0 %v117
    %1364 = vmatpush.msra.mxu0 %v116
    %1365 = vmatmul.f32.gmra.mxu0 %v1347
    %v1366 = vpop.f32.mrf.mxu0
    %v1367 = vadd.f32 0.0, %v1366
    %1368 = vdwg.mxu0
    %v1369 = vadd.f32 %v1190, %v1367
    %v1370 = vxor.u32 %v1369, 2147483648
    %v1371 = vmul.f32 %v1370, 1.442695
    %v1372 = vpow.pop %v1371
    %v1373 = vadd.f32 %v1372, 1.0
    %v1374 = vrcp.pop %v1373
    %v1375 = vmul.f32 %v1373, %v1374
    %v1376 = vsub.f32 1.0, %v1375
    %v1377 = vmul.f32 %v1374, %v1376
    %v1378 = vadd.f32 %v1374, %v1377
    %vm1379 = vweird.f32 %v1373
    %vm1380 = vweird.f32 %v1374
    %vm1381 = vmor %vm1379, %vm1380
    %v1382 = vsel %vm1381, %v1374, %v1378
    %v1383 = vand.u32 2147483647, %v1373
    %vm1384 = vcmp.eq.f32.partialorder %v1383, 8.507059e+37
    %v1385 = vand.u32 %v1373, 2147483648
    %v1386 = vor.u32 1.1754944e-38, %v1385
    %v1387 = vsel %vm1384, %v1386, %v1382
    %v1388 = vmul.f32 1.0, %v1387
    %v1389 = vtanh.pop %v1369
    %v1390 = vmul.f32 %v1388, %v1155
    %1392 = vrot.lane.b32.xlu0 %v1389, 32
    %v1393 = vpop.permute.xlu0 %1392
    %v1395 = vmul.f32 %v1388, %v1393
    %1397 = vrot.lane.b32.xlu0 %v1395, 32
    %v1398 = vpop.permute.xlu0 %1397
    %v1400 = vadd.f32 %v1390, %v1398
    %v1401 = vtanh.pop %v1400
    %1403 = vrot.lane.b32.xlu0 %v1401, 32
    %v1404 = vpop.permute.xlu0 %1403
    %v1406 = vmul.f32 %v1388, %v1404
    %1408 = vrot.lane.b32.xlu0 %v1406, 64
    %v1409 = vpop.permute.xlu0 %1408
    %1411 = vst.msk [vmem:[#allocation11 + $0x2] sm:$0x3] %vm413, %v1409
    %v1413 = vrot.slane %v152, 2
    %v1415 = vsel %vm124, %v1409, 0
    %1417 = vmatpush.msra.mxu0 0.0
    %1418 = vmatpush.msra.mxu0 0.0
    %1419 = vmatpush.msra.mxu0 0.0
    %1420 = vmatpush.msra.mxu0 0.0
    %1421 = vmatpush.msra.mxu0 0.0
    %1422 = vmatpush.msra.mxu0 0.0
    %1423 = vmatpush.msra.mxu0 0.0
    %1424 = vmatpush.msra.mxu0 0.0
    %1425 = vmatpush.msra.mxu0 0.0
    %1426 = vmatpush.msra.mxu0 0.0
    %1427 = vmatpush.msra.mxu0 0.0
    %1428 = vmatpush.msra.mxu0 0.0
    %1429 = vmatpush.msra.mxu0 %v115
    %1430 = vmatpush.msra.mxu0 %v114
    %1431 = vmatpush.msra.mxu0 %v113
    %1432 = vmatpush.msra.mxu0 %v112
    %1433 = vmatmul.f32.gmra.mxu0 %v1415
    %v1434 = vpop.f32.mrf.mxu0
    %v1435 = vadd.f32 %v1413, %v1434
    %1436 = vdwg.mxu0
    %v1437 = vrot.slane %v1406, 1
    %v1438 = vperm.slane %v1406, 0
    %v1439 = vperm.slane %v1437, 0
    %v1442 = vmul.f32 %v1438, %v450
    %v1443 = vmul.f32 %v1438, %v452
    %v1444 = vmul.f32 %v1439, %v454
    %v1445 = vmul.f32 %v1439, %v456
    %1450 = vrot.lane.b32.xlu0 %v1442, 64
    %v1451 = vpop.permute.xlu0 %1450
    %1452 = vrot.lane.b32.xlu0 %v1443, 64
    %v1453 = vpop.permute.xlu0 %1452
    %1454 = vrot.lane.b32.xlu0 %v1444, 64
    %v1455 = vpop.permute.xlu0 %1454
    %1456 = vrot.lane.b32.xlu0 %v1445, 64
    %v1457 = vpop.permute.xlu0 %1456
    %v1462 = vsel %vm124, %v1451, 0.0
    %1463 = vadd.xlane.f32.xlu0 %v1462
    %v1464 = vpop.xlane.xlu0 %1463
    %v1465 = vsel %vm124, %v1453, 0.0
    %1466 = vadd.xlane.f32.xlu0 %v1465
    %v1467 = vpop.xlane.xlu0 %1466
    %v1468 = vsel %vm124, %v1455, 0.0
    %1469 = vadd.xlane.f32.xlu0 %v1468
    %v1470 = vpop.xlane.xlu0 %1469
    %v1471 = vsel %vm124, %v1457, 0.0
    %1472 = vadd.xlane.f32.xlu0 %v1471
    %v1473 = vpop.xlane.xlu0 %1472
    %v1474 = vmul.f32 %v1464, 0.17677669
    %v1475 = vmul.f32 %v1467, 0.17677669
    %v1476 = vmul.f32 %v1470, 0.17677669
    %v1477 = vmul.f32 %v1473, 0.17677669
    %v1482 = vperm.slane %v1474, %v232
    %v1483 = vperm.slane %v1475, %v234
    %v1484 = vsel %vm236, %v1483, %v1482
    %v1485 = vperm.slane %v1476, %v232
    %v1486 = vperm.slane %v1477, %v234
    %v1487 = vsel %vm236, %v1486, %v1485
    %v1488 = vsel %vm183, %v1487, %v1484
    %v1490 = vsel %vm243, %v1488, -inf
    %1491 = vmax.xlane.f32.xlu0 %v1490
    %v1492 = vpop.xlane.xlu0 %1491
    %v1494 = vperm.slane %v1492, 0
    %v1495 = vperm.slane %v1492, 1
    %v1498 = vsub.f32 %v1474, %v1494
    %v1499 = vsub.f32 %v1475, %v1494
    %v1500 = vsub.f32 %v1476, %v1495
    %v1501 = vsub.f32 %v1477, %v1495
    %v1502 = vmul.f32 %v1498, 1.442695
    %v1503 = vpow.pop %v1502
    %v1504 = vmul.f32 %v1499, 1.442695
    %v1505 = vpow.pop %v1504
    %v1506 = vmul.f32 %v1500, 1.442695
    %v1507 = vpow.pop %v1506
    %v1508 = vmul.f32 %v1501, 1.442695
    %v1509 = vpow.pop %v1508
    %1514 = vset.pattern.permute.xlu0 0
    %1515 = vperm.xlu0 %1514, %v1503
    %v1516 = vpop.permute.xlu0 %1515
    %1517 = vset.pattern.permute.xlu0 0
    %1518 = vperm.xlu0 %1517, %v1505
    %v1519 = vpop.permute.xlu0 %1518
    %1520 = vset.pattern.permute.xlu0 0
    %1521 = vperm.xlu0 %1520, %v1507
    %v1522 = vpop.permute.xlu0 %1521
    %1523 = vset.pattern.permute.xlu0 0
    %1524 = vperm.xlu0 %1523, %v1509
    %v1525 = vpop.permute.xlu0 %1524
    %v1526 = vperm.slane %v1516, %v232
    %v1527 = vperm.slane %v1519, %v234
    %v1528 = vsel %vm236, %v1527, %v1526
    %v1529 = vperm.slane %v1522, %v232
    %v1530 = vperm.slane %v1525, %v234
    %v1531 = vsel %vm236, %v1530, %v1529
    %v1532 = vsel %vm183, %v1531, %v1528
    %v1534 = vsel %vm243, %v1532, 0.0
    %1535 = vadd.xlane.f32.xlu0 %v1534
    %v1536 = vpop.xlane.xlu0 %1535
    %v1537 = vrcp.pop %v1536
    %v1539 = vperm.slane %v1537, 0
    %v1540 = vperm.slane %v1537, 1
    %v1543 = vmul.f32 %v1503, %v1539
    %v1544 = vmul.f32 %v1505, %v1539
    %v1545 = vmul.f32 %v1507, %v1540
    %v1546 = vmul.f32 %v1509, %v1540
    %1548 = vset.pattern.permute.xlu0 0
    %1549 = vperm.xlu0 %1548, %v1543
    %v1550 = vpop.permute.xlu0 %1549
    %1553 = vset.pattern.permute.xlu0 0
    %1554 = vperm.xlu0 %1553, %v1544
    %v1555 = vpop.permute.xlu0 %1554
    %1558 = vset.pattern.permute.xlu0 0
    %1559 = vperm.xlu0 %1558, %v1545
    %v1560 = vpop.permute.xlu0 %1559
    %1563 = vset.pattern.permute.xlu0 0
    %1564 = vperm.xlu0 %1563, %v1546
    %v1565 = vpop.permute.xlu0 %1564
    %v1567 = vmul.f32 %v1550, %v104
    %v1568 = vmul.f32 %v1555, %v105
    %v1569 = vmul.f32 %v1560, %v106
    %v1570 = vmul.f32 %v1565, %v107
    %v1571 = vsel %vm124, %v1567, 0.0
    %v1572 = vsel %vm124, %v1568, 0.0
    %v1573 = vadd.f32 %v1571, %v1572
    %v1574 = vrot.slane %v1573, 4
    %v1575 = vadd.f32 %v1573, %v1574
    %v1576 = vrot.slane %v1575, 2
    %v1577 = vadd.f32 %v1575, %v1576
    %v1578 = vrot.slane %v1577, 1
    %v1579 = vadd.f32 %v1577, %v1578
    %v1580 = vsel %vm124, %v1569, 0.0
    %v1581 = vsel %vm124, %v1570, 0.0
    %v1582 = vadd.f32 %v1580, %v1581
    %v1583 = vrot.slane %v1582, 4
    %v1584 = vadd.f32 %v1582, %v1583
    %v1585 = vrot.slane %v1584, 2
    %v1586 = vadd.f32 %v1584, %v1585
    %v1587 = vrot.slane %v1586, 1
    %v1588 = vadd.f32 %v1586, %v1587
    %v1591 = vsel %vm183, %v1588, %v1579
    %v1592 = vsel %vm124, %v1591, 0
    %1594 = vmatpush.msra.mxu0 0.0
    %1595 = vmatpush.msra.mxu0 0.0
    %1596 = vmatpush.msra.mxu0 0.0
    %1597 = vmatpush.msra.mxu0 0.0
    %1598 = vmatpush.msra.mxu0 0.0
    %1599 = vmatpush.msra.mxu0 0.0
    %1600 = vmatpush.msra.mxu0 0.0
    %1601 = vmatpush.msra.mxu0 0.0
    %1602 = vmatpush.msra.mxu0 0.0
    %1603 = vmatpush.msra.mxu0 0.0
    %1604 = vmatpush.msra.mxu0 0.0
    %1605 = vmatpush.msra.mxu0 0.0
    %1606 = vmatpush.msra.mxu0 %v119
    %1607 = vmatpush.msra.mxu0 %v118
    %1608 = vmatpush.msra.mxu0 %v117
    %1609 = vmatpush.msra.mxu0 %v116
    %1610 = vmatmul.f32.gmra.mxu0 %v1592
    %v1611 = vpop.f32.mrf.mxu0
    %v1612 = vadd.f32 0.0, %v1611
    %1613 = vdwg.mxu0
    %v1614 = vadd.f32 %v1435, %v1612
    %v1615 = vxor.u32 %v1614, 2147483648
    %v1616 = vmul.f32 %v1615, 1.442695
    %v1617 = vpow.pop %v1616
    %v1618 = vadd.f32 %v1617, 1.0
    %v1619 = vrcp.pop %v1618
    %v1620 = vmul.f32 %v1618, %v1619
    %v1621 = vsub.f32 1.0, %v1620
    %v1622 = vmul.f32 %v1619, %v1621
    %v1623 = vadd.f32 %v1619, %v1622
    %vm1624 = vweird.f32 %v1618
    %vm1625 = vweird.f32 %v1619
    %vm1626 = vmor %vm1624, %vm1625
    %v1627 = vsel %vm1626, %v1619, %v1623
    %v1628 = vand.u32 2147483647, %v1618
    %vm1629 = vcmp.eq.f32.partialorder %v1628, 8.507059e+37
    %v1630 = vand.u32 %v1618, 2147483648
    %v1631 = vor.u32 1.1754944e-38, %v1630
    %v1632 = vsel %vm1629, %v1631, %v1627
    %v1633 = vmul.f32 1.0, %v1632
    %v1634 = vtanh.pop %v1614
    %v1635 = vmul.f32 %v1633, %v1400
    %1637 = vrot.lane.b32.xlu0 %v1634, 32
    %v1638 = vpop.permute.xlu0 %1637
    %v1640 = vmul.f32 %v1633, %v1638
    %1642 = vrot.lane.b32.xlu0 %v1640, 32
    %v1643 = vpop.permute.xlu0 %1642
    %v1645 = vadd.f32 %v1635, %v1643
    %v1646 = vtanh.pop %v1645
    %1648 = vrot.lane.b32.xlu0 %v1646, 32
    %v1649 = vpop.permute.xlu0 %1648
    %v1651 = vmul.f32 %v1633, %v1649
    %1653 = vrot.lane.b32.xlu0 %v1651, 96
    %v1654 = vpop.permute.xlu0 %1653
    %1656 = vst.msk [vmem:[#allocation11 + $0x2] sm:$0x3] %vm675, %v1654
    %1657 = vrot.lane.b32.xlu0 %v1651, 64
    %v1658 = vpop.permute.xlu0 %1657
    %v1659 = vrot.slane %v152, 4
    %v1661 = vsel %vm124, %v1658, 0
    %1663 = vmatpush.msra.mxu0 0.0
    %1664 = vmatpush.msra.mxu0 0.0
    %1665 = vmatpush.msra.mxu0 0.0
    %1666 = vmatpush.msra.mxu0 0.0
    %1667 = vmatpush.msra.mxu0 0.0
    %1668 = vmatpush.msra.mxu0 0.0
    %1669 = vmatpush.msra.mxu0 0.0
    %1670 = vmatpush.msra.mxu0 0.0
    %1671 = vmatpush.msra.mxu0 0.0
    %1672 = vmatpush.msra.mxu0 0.0
    %1673 = vmatpush.msra.mxu0 0.0
    %1674 = vmatpush.msra.mxu0 0.0
    %1675 = vmatpush.msra.mxu0 %v115
    %1676 = vmatpush.msra.mxu0 %v114
    %1677 = vmatpush.msra.mxu0 %v113
    %1678 = vmatpush.msra.mxu0 %v112
    %1679 = vmatmul.f32.gmra.mxu0 %v1661
    %v1680 = vpop.f32.mrf.mxu0
    %v1681 = vadd.f32 %v1659, %v1680
    %1682 = vdwg.mxu0
    %v1683 = vrot.slane %v1651, 1
    %v1684 = vperm.slane %v1651, 0
    %v1685 = vperm.slane %v1683, 0
    %v1688 = vmul.f32 %v1684, %v450
    %v1689 = vmul.f32 %v1684, %v452
    %v1690 = vmul.f32 %v1685, %v454
    %v1691 = vmul.f32 %v1685, %v456
    %1696 = vrot.lane.b32.xlu0 %v1688, 64
    %v1697 = vpop.permute.xlu0 %1696
    %1698 = vrot.lane.b32.xlu0 %v1689, 64
    %v1699 = vpop.permute.xlu0 %1698
    %1700 = vrot.lane.b32.xlu0 %v1690, 64
    %v1701 = vpop.permute.xlu0 %1700
    %1702 = vrot.lane.b32.xlu0 %v1691, 64
    %v1703 = vpop.permute.xlu0 %1702
    %v1708 = vsel %vm124, %v1697, 0.0
    %1709 = vadd.xlane.f32.xlu0 %v1708
    %v1710 = vpop.xlane.xlu0 %1709
    %v1711 = vsel %vm124, %v1699, 0.0
    %1712 = vadd.xlane.f32.xlu0 %v1711
    %v1713 = vpop.xlane.xlu0 %1712
    %v1714 = vsel %vm124, %v1701, 0.0
    %1715 = vadd.xlane.f32.xlu0 %v1714
    %v1716 = vpop.xlane.xlu0 %1715
    %v1717 = vsel %vm124, %v1703, 0.0
    %1718 = vadd.xlane.f32.xlu0 %v1717
    %v1719 = vpop.xlane.xlu0 %1718
    %v1720 = vmul.f32 %v1710, 0.17677669
    %v1721 = vmul.f32 %v1713, 0.17677669
    %v1722 = vmul.f32 %v1716, 0.17677669
    %v1723 = vmul.f32 %v1719, 0.17677669
    %v1728 = vperm.slane %v1720, %v232
    %v1729 = vperm.slane %v1721, %v234
    %v1730 = vsel %vm236, %v1729, %v1728
    %v1731 = vperm.slane %v1722, %v232
    %v1732 = vperm.slane %v1723, %v234
    %v1733 = vsel %vm236, %v1732, %v1731
    %v1734 = vsel %vm183, %v1733, %v1730
    %v1736 = vsel %vm243, %v1734, -inf
    %1737 = vmax.xlane.f32.xlu0 %v1736
    %v1738 = vpop.xlane.xlu0 %1737
    %v1740 = vperm.slane %v1738, 0
    %v1741 = vperm.slane %v1738, 1
    %v1744 = vsub.f32 %v1720, %v1740
    %v1745 = vsub.f32 %v1721, %v1740
    %v1746 = vsub.f32 %v1722, %v1741
    %v1747 = vsub.f32 %v1723, %v1741
    %v1748 = vmul.f32 %v1744, 1.442695
    %v1749 = vpow.pop %v1748
    %v1750 = vmul.f32 %v1745, 1.442695
    %v1751 = vpow.pop %v1750
    %v1752 = vmul.f32 %v1746, 1.442695
    %v1753 = vpow.pop %v1752
    %v1754 = vmul.f32 %v1747, 1.442695
    %v1755 = vpow.pop %v1754
    %1760 = vset.pattern.permute.xlu0 0
    %1761 = vperm.xlu0 %1760, %v1749
    %v1762 = vpop.permute.xlu0 %1761
    %1763 = vset.pattern.permute.xlu0 0
    %1764 = vperm.xlu0 %1763, %v1751
    %v1765 = vpop.permute.xlu0 %1764
    %1766 = vset.pattern.permute.xlu0 0
    %1767 = vperm.xlu0 %1766, %v1753
    %v1768 = vpop.permute.xlu0 %1767
    %1769 = vset.pattern.permute.xlu0 0
    %1770 = vperm.xlu0 %1769, %v1755
    %v1771 = vpop.permute.xlu0 %1770
    %v1772 = vperm.slane %v1762, %v232
    %v1773 = vperm.slane %v1765, %v234
    %v1774 = vsel %vm236, %v1773, %v1772
    %v1775 = vperm.slane %v1768, %v232
    %v1776 = vperm.slane %v1771, %v234
    %v1777 = vsel %vm236, %v1776, %v1775
    %v1778 = vsel %vm183, %v1777, %v1774
    %v1780 = vsel %vm243, %v1778, 0.0
    %1781 = vadd.xlane.f32.xlu0 %v1780
    %v1782 = vpop.xlane.xlu0 %1781
    %v1783 = vrcp.pop %v1782
    %v1785 = vperm.slane %v1783, 0
    %v1786 = vperm.slane %v1783, 1
    %v1789 = vmul.f32 %v1749, %v1785
    %v1790 = vmul.f32 %v1751, %v1785
    %v1791 = vmul.f32 %v1753, %v1786
    %v1792 = vmul.f32 %v1755, %v1786
    %1794 = vset.pattern.permute.xlu0 0
    %1795 = vperm.xlu0 %1794, %v1789
    %v1796 = vpop.permute.xlu0 %1795
    %1799 = vset.pattern.permute.xlu0 0
    %1800 = vperm.xlu0 %1799, %v1790
    %v1801 = vpop.permute.xlu0 %1800
    %1804 = vset.pattern.permute.xlu0 0
    %1805 = vperm.xlu0 %1804, %v1791
    %v1806 = vpop.permute.xlu0 %1805
    %1809 = vset.pattern.permute.xlu0 0
    %1810 = vperm.xlu0 %1809, %v1792
    %v1811 = vpop.permute.xlu0 %1810
    %v1813 = vmul.f32 %v1796, %v104
    %v1814 = vmul.f32 %v1801, %v105
    %v1815 = vmul.f32 %v1806, %v106
    %v1816 = vmul.f32 %v1811, %v107
    %v1817 = vsel %vm124, %v1813, 0.0
    %v1818 = vsel %vm124, %v1814, 0.0
    %v1819 = vadd.f32 %v1817, %v1818
    %v1820 = vrot.slane %v1819, 4
    %v1821 = vadd.f32 %v1819, %v1820
    %v1822 = vrot.slane %v1821, 2
    %v1823 = vadd.f32 %v1821, %v1822
    %v1824 = vrot.slane %v1823, 1
    %v1825 = vadd.f32 %v1823, %v1824
    %v1826 = vsel %vm124, %v1815, 0.0
    %v1827 = vsel %vm124, %v1816, 0.0
    %v1828 = vadd.f32 %v1826, %v1827
    %v1829 = vrot.slane %v1828, 4
    %v1830 = vadd.f32 %v1828, %v1829
    %v1831 = vrot.slane %v1830, 2
    %v1832 = vadd.f32 %v1830, %v1831
    %v1833 = vrot.slane %v1832, 1
    %v1834 = vadd.f32 %v1832, %v1833
    %v1837 = vsel %vm183, %v1834, %v1825
    %v1838 = vsel %vm124, %v1837, 0
    %1840 = vmatpush.msra.mxu0 0.0
    %1841 = vmatpush.msra.mxu0 0.0
    %1842 = vmatpush.msra.mxu0 0.0
    %1843 = vmatpush.msra.mxu0 0.0
    %1844 = vmatpush.msra.mxu0 0.0
    %1845 = vmatpush.msra.mxu0 0.0
    %1846 = vmatpush.msra.mxu0 0.0
    %1847 = vmatpush.msra.mxu0 0.0
    %1848 = vmatpush.msra.mxu0 0.0
    %1849 = vmatpush.msra.mxu0 0.0
    %1850 = vmatpush.msra.mxu0 0.0
    %1851 = vmatpush.msra.mxu0 0.0
    %1852 = vmatpush.msra.mxu0 %v119
    %1853 = vmatpush.msra.mxu0 %v118
    %1854 = vmatpush.msra.mxu0 %v117
    %1855 = vmatpush.msra.mxu0 %v116
    %1856 = vmatmul.f32.gmra.mxu0 %v1838
    %v1857 = vpop.f32.mrf.mxu0
    %v1858 = vadd.f32 0.0, %v1857
    %1859 = vdwg.mxu0
    %v1860 = vadd.f32 %v1681, %v1858
    %v1861 = vxor.u32 %v1860, 2147483648
    %v1862 = vmul.f32 %v1861, 1.442695
    %v1863 = vpow.pop %v1862
    %v1864 = vadd.f32 %v1863, 1.0
    %v1865 = vrcp.pop %v1864
    %v1866 = vmul.f32 %v1864, %v1865
    %v1867 = vsub.f32 1.0, %v1866
    %v1868 = vmul.f32 %v1865, %v1867
    %v1869 = vadd.f32 %v1865, %v1868
    %vm1870 = vweird.f32 %v1864
    %vm1871 = vweird.f32 %v1865
    %vm1872 = vmor %vm1870, %vm1871
    %v1873 = vsel %vm1872, %v1865, %v1869
    %v1874 = vand.u32 2147483647, %v1864
    %vm1875 = vcmp.eq.f32.partialorder %v1874, 8.507059e+37
    %v1876 = vand.u32 %v1864, 2147483648
    %v1877 = vor.u32 1.1754944e-38, %v1876
    %v1878 = vsel %vm1875, %v1877, %v1873
    %v1879 = vmul.f32 1.0, %v1878
    %v1880 = vtanh.pop %v1860
    %v1881 = vmul.f32 %v1879, %v1645
    %1883 = vrot.lane.b32.xlu0 %v1880, 32
    %v1884 = vpop.permute.xlu0 %1883
    %v1886 = vmul.f32 %v1879, %v1884
    %1888 = vrot.lane.b32.xlu0 %v1886, 32
    %v1889 = vpop.permute.xlu0 %1888
    %v1891 = vadd.f32 %v1881, %v1889
    %v1892 = vtanh.pop %v1891
    %1894 = vrot.lane.b32.xlu0 %v1892, 32
    %v1895 = vpop.permute.xlu0 %1894
    %v1897 = vmul.f32 %v1879, %v1895
    %1898 = vst.msk [vmem:[#allocation11 + $0x2] sm:$0x3] %vm918, %v1897
    %1900 = vrot.lane.b32.xlu0 %v1897, 64
    %v1901 = vpop.permute.xlu0 %1900
    %v1902 = vrot.slane %v152, 6
    %v1904 = vsel %vm124, %v1901, 0
    %1906 = vmatpush.msra.mxu0 0.0
    %1907 = vmatpush.msra.mxu0 0.0
    %1908 = vmatpush.msra.mxu0 0.0
    %1909 = vmatpush.msra.mxu0 0.0
    %1910 = vmatpush.msra.mxu0 0.0
    %1911 = vmatpush.msra.mxu0 0.0
    %1912 = vmatpush.msra.mxu0 0.0
    %1913 = vmatpush.msra.mxu0 0.0
    %1914 = vmatpush.msra.mxu0 0.0
    %1915 = vmatpush.msra.mxu0 0.0
    %1916 = vmatpush.msra.mxu0 0.0
    %1917 = vmatpush.msra.mxu0 0.0
    %1918 = vmatpush.msra.mxu0 %v115
    %1919 = vmatpush.msra.mxu0 %v114
    %1920 = vmatpush.msra.mxu0 %v113
    %1921 = vmatpush.msra.mxu0 %v112
    %1922 = vmatmul.f32.gmra.mxu0 %v1904
    %v1923 = vpop.f32.mrf.mxu0
    %v1924 = vadd.f32 %v1902, %v1923
    %1925 = vdwg.mxu0
    %v1926 = vrot.slane %v1897, 1
    %v1927 = vperm.slane %v1897, 0
    %v1928 = vperm.slane %v1926, 0
    %v1931 = vmul.f32 %v1927, %v450
    %v1932 = vmul.f32 %v1927, %v452
    %v1933 = vmul.f32 %v1928, %v454
    %v1934 = vmul.f32 %v1928, %v456
    %1939 = vrot.lane.b32.xlu0 %v1931, 64
    %v1940 = vpop.permute.xlu0 %1939
    %1941 = vrot.lane.b32.xlu0 %v1932, 64
    %v1942 = vpop.permute.xlu0 %1941
    %1943 = vrot.lane.b32.xlu0 %v1933, 64
    %v1944 = vpop.permute.xlu0 %1943
    %1945 = vrot.lane.b32.xlu0 %v1934, 64
    %v1946 = vpop.permute.xlu0 %1945
    %v1951 = vsel %vm124, %v1940, 0.0
    %1952 = vadd.xlane.f32.xlu0 %v1951
    %v1953 = vpop.xlane.xlu0 %1952
    %v1954 = vsel %vm124, %v1942, 0.0
    %1955 = vadd.xlane.f32.xlu0 %v1954
    %v1956 = vpop.xlane.xlu0 %1955
    %v1957 = vsel %vm124, %v1944, 0.0
    %1958 = vadd.xlane.f32.xlu0 %v1957
    %v1959 = vpop.xlane.xlu0 %1958
    %v1960 = vsel %vm124, %v1946, 0.0
    %1961 = vadd.xlane.f32.xlu0 %v1960
    %v1962 = vpop.xlane.xlu0 %1961
    %v1963 = vmul.f32 %v1953, 0.17677669
    %v1964 = vmul.f32 %v1956, 0.17677669
    %v1965 = vmul.f32 %v1959, 0.17677669
    %v1966 = vmul.f32 %v1962, 0.17677669
    %v1971 = vperm.slane %v1963, %v232
    %v1972 = vperm.slane %v1964, %v234
    %v1973 = vsel %vm236, %v1972, %v1971
    %v1974 = vperm.slane %v1965, %v232
    %v1975 = vperm.slane %v1966, %v234
    %v1976 = vsel %vm236, %v1975, %v1974
    %v1977 = vsel %vm183, %v1976, %v1973
    %v1979 = vsel %vm243, %v1977, -inf
    %1980 = vmax.xlane.f32.xlu0 %v1979
    %v1981 = vpop.xlane.xlu0 %1980
    %v1983 = vperm.slane %v1981, 0
    %v1984 = vperm.slane %v1981, 1
    %v1987 = vsub.f32 %v1963, %v1983
    %v1988 = vsub.f32 %v1964, %v1983
    %v1989 = vsub.f32 %v1965, %v1984
    %v1990 = vsub.f32 %v1966, %v1984
    %v1991 = vmul.f32 %v1987, 1.442695
    %v1992 = vpow.pop %v1991
    %v1993 = vmul.f32 %v1988, 1.442695
    %v1994 = vpow.pop %v1993
    %v1995 = vmul.f32 %v1989, 1.442695
    %v1996 = vpow.pop %v1995
    %v1997 = vmul.f32 %v1990, 1.442695
    %v1998 = vpow.pop %v1997
    %2003 = vset.pattern.permute.xlu0 0
    %2004 = vperm.xlu0 %2003, %v1992
    %v2005 = vpop.permute.xlu0 %2004
    %2006 = vset.pattern.permute.xlu0 0
    %2007 = vperm.xlu0 %2006, %v1994
    %v2008 = vpop.permute.xlu0 %2007
    %2009 = vset.pattern.permute.xlu0 0
    %2010 = vperm.xlu0 %2009, %v1996
    %v2011 = vpop.permute.xlu0 %2010
    %2012 = vset.pattern.permute.xlu0 0
    %2013 = vperm.xlu0 %2012, %v1998
    %v2014 = vpop.permute.xlu0 %2013
    %v2015 = vperm.slane %v2005, %v232
    %v2016 = vperm.slane %v2008, %v234
    %v2017 = vsel %vm236, %v2016, %v2015
    %v2018 = vperm.slane %v2011, %v232
    %v2019 = vperm.slane %v2014, %v234
    %v2020 = vsel %vm236, %v2019, %v2018
    %v2021 = vsel %vm183, %v2020, %v2017
    %v2023 = vsel %vm243, %v2021, 0.0
    %2024 = vadd.xlane.f32.xlu0 %v2023
    %v2025 = vpop.xlane.xlu0 %2024
    %v2026 = vrcp.pop %v2025
    %v2028 = vperm.slane %v2026, 0
    %v2029 = vperm.slane %v2026, 1
    %v2032 = vmul.f32 %v1992, %v2028
    %v2033 = vmul.f32 %v1994, %v2028
    %v2034 = vmul.f32 %v1996, %v2029
    %v2035 = vmul.f32 %v1998, %v2029
    %2037 = vset.pattern.permute.xlu0 0
    %2038 = vperm.xlu0 %2037, %v2032
    %v2039 = vpop.permute.xlu0 %2038
    %2042 = vset.pattern.permute.xlu0 0
    %2043 = vperm.xlu0 %2042, %v2033
    %v2044 = vpop.permute.xlu0 %2043
    %2047 = vset.pattern.permute.xlu0 0
    %2048 = vperm.xlu0 %2047, %v2034
    %v2049 = vpop.permute.xlu0 %2048
    %2052 = vset.pattern.permute.xlu0 0
    %2053 = vperm.xlu0 %2052, %v2035
    %v2054 = vpop.permute.xlu0 %2053
    %v2056 = vmul.f32 %v2039, %v104
    %v2057 = vmul.f32 %v2044, %v105
    %v2058 = vmul.f32 %v2049, %v106
    %v2059 = vmul.f32 %v2054, %v107
    %v2060 = vsel %vm124, %v2056, 0.0
    %v2061 = vsel %vm124, %v2057, 0.0
    %v2062 = vadd.f32 %v2060, %v2061
    %v2063 = vrot.slane %v2062, 4
    %v2064 = vadd.f32 %v2062, %v2063
    %v2065 = vrot.slane %v2064, 2
    %v2066 = vadd.f32 %v2064, %v2065
    %v2067 = vrot.slane %v2066, 1
    %v2068 = vadd.f32 %v2066, %v2067
    %v2069 = vsel %vm124, %v2058, 0.0
    %v2070 = vsel %vm124, %v2059, 0.0
    %v2071 = vadd.f32 %v2069, %v2070
    %v2072 = vrot.slane %v2071, 4
    %v2073 = vadd.f32 %v2071, %v2072
    %v2074 = vrot.slane %v2073, 2
    %v2075 = vadd.f32 %v2073, %v2074
    %v2076 = vrot.slane %v2075, 1
    %v2077 = vadd.f32 %v2075, %v2076
    %v2080 = vsel %vm183, %v2077, %v2068
    %v2081 = vsel %vm124, %v2080, 0
    %2083 = vmatpush.msra.mxu0 0.0
    %2084 = vmatpush.msra.mxu0 0.0
    %2085 = vmatpush.msra.mxu0 0.0
    %2086 = vmatpush.msra.mxu0 0.0
    %2087 = vmatpush.msra.mxu0 0.0
    %2088 = vmatpush.msra.mxu0 0.0
    %2089 = vmatpush.msra.mxu0 0.0
    %2090 = vmatpush.msra.mxu0 0.0
    %2091 = vmatpush.msra.mxu0 0.0
    %2092 = vmatpush.msra.mxu0 0.0
    %2093 = vmatpush.msra.mxu0 0.0
    %2094 = vmatpush.msra.mxu0 0.0
    %2095 = vmatpush.msra.mxu0 %v119
    %2096 = vmatpush.msra.mxu0 %v118
    %2097 = vmatpush.msra.mxu0 %v117
    %2098 = vmatpush.msra.mxu0 %v116
    %2099 = vmatmul.f32.gmra.mxu0 %v2081
    %v2100 = vpop.f32.mrf.mxu0
    %v2101 = vadd.f32 0.0, %v2100
    %2102 = vdwg.mxu0
    %v2103 = vadd.f32 %v1924, %v2101
    %v2104 = vxor.u32 %v2103, 2147483648
    %v2105 = vmul.f32 %v2104, 1.442695
    %v2106 = vpow.pop %v2105
    %v2107 = vadd.f32 %v2106, 1.0
    %v2108 = vrcp.pop %v2107
    %v2109 = vmul.f32 %v2107, %v2108
    %v2110 = vsub.f32 1.0, %v2109
    %v2111 = vmul.f32 %v2108, %v2110
    %v2112 = vadd.f32 %v2108, %v2111
    %vm2113 = vweird.f32 %v2107
    %vm2114 = vweird.f32 %v2108
    %vm2115 = vmor %vm2113, %vm2114
    %v2116 = vsel %vm2115, %v2108, %v2112
    %v2117 = vand.u32 2147483647, %v2107
    %vm2118 = vcmp.eq.f32.partialorder %v2117, 8.507059e+37
    %v2119 = vand.u32 %v2107, 2147483648
    %v2120 = vor.u32 1.1754944e-38, %v2119
    %v2121 = vsel %vm2118, %v2120, %v2116
    %v2122 = vmul.f32 1.0, %v2121
    %v2123 = vtanh.pop %v2103
    %v2124 = vmul.f32 %v2122, %v1891
    %2126 = vrot.lane.b32.xlu0 %v2123, 32
    %v2127 = vpop.permute.xlu0 %2126
    %v2129 = vmul.f32 %v2122, %v2127
    %2131 = vrot.lane.b32.xlu0 %v2129, 32
    %v2132 = vpop.permute.xlu0 %2131
    %v2134 = vadd.f32 %v2124, %v2132
    %v2135 = vtanh.pop %v2134
    %2137 = vrot.lane.b32.xlu0 %v2135, 32
    %v2138 = vpop.permute.xlu0 %2137
    %v2140 = vmul.f32 %v2122, %v2138
    %2142 = vrot.lane.b32.xlu0 %v2140, 32
    %v2143 = vpop.permute.xlu0 %2142
    %2145 = vst.msk [vmem:[#allocation11 + $0x2] sm:$0x3] %vm1166, %v2143
    // Predicated region
    $region46: #{tpu_custom_call.1} parent=1 // pred_check
      _
    $region47: #{tpu_custom_call.1} parent=1 // pred_check_branch
      %2147 = sbr.rel (0) target = $region49
    $region48: #{tpu_custom_call.1} parent=1 // pred_region
      %2149 = vsyncadd [#allocation4], 0
      %s2151 = sshll.u32 [#allocation11], 4
      %s2152 = int_to_ptr.vmem [resolvable:$true] %s2151
      %s2153 = sshll.u32 %s6, 4
      %s2154 = int_to_ptr.hbm [resolvable:$true] %s2153
      %2156 = dma.vmem_to_hbm [thread:$0]  %s2152, 64, %s2154, [#allocation4]
    $region49: #{tpu_custom_call.1} parent=1 // pred_fallthru
      _
    // Predicated region
    $region50: #{tpu_custom_call.1} parent=1 // pred_check
      _
    $region51: #{tpu_custom_call.1} parent=1 // pred_check_branch
      %2158 = sbr.rel (0) target = $region53
    $region52: #{tpu_custom_call.1} parent=1 // pred_region
      %2160 = dma.done [#allocation4], 64
    $region53: #{tpu_custom_call.1} parent=1 // pred_fallthru
      _
    %2161 = vsyncpa [#allocation3], 1
    %2162 = vsyncpa [#allocation6], 1
    %2163 = vsyncpa [#allocation9], 1
    %2164 = vsyncpa [#allocation4], 1

</llo_original>
